<compile_context>
chip_gen: v6e
topology: v6e:2x2x1
jax: 0.10.0
libtpu: 0.0.40
codegen_flags: <defaults>
</compile_context>

<pallas_src>
import functools

import jax
import jax.numpy as jnp
from jax import lax
from jax.experimental import pallas as pl
from jax.experimental.pallas import tpu as pltpu

IGNORE_INDEX = -100
ALPHA = 0.9
BLUR = 0.05      # SamplesLoss(loss='sinkhorn', p=1, blur=0.05) -> epsilon = blur**p
SCALING = 0.5    # geomloss default epsilon-scaling factor
SINKHORN_ITERS = 20  # fixed-length eps schedule (see TODO in sinkhorn_divergence)

_NEG_LOGWEIGHT = -1e5   # finite "log(0)" for zero-weight rows (keeps duals finite)

# dot_general dims for A @ B.T without materializing a transpose (MXU-native NT).
_NT_DIMS = (((1,), (1,)), ((), ()))


def _round_up(n, m):
    return ((n + m - 1) // m) * m


def _default_vmem_limit():
    """Generation-aware scoped-VMEM limit: ~80% of physical, capped at 112 MiB.

    Falls back to 80% of 64 MiB (v7x physical per-TC VMEM) if the hardware query
    is unavailable, so the limit never exceeds physical VMEM on any generation.
    """
    try:
        cap = int(pltpu.get_tpu_info().vmem_capacity_bytes)
    except Exception:
        cap = 64 * 1024 * 1024
    return int(min(int(cap * 0.8), 112 * 1024 * 1024))


_VMEM_LIMIT = _default_vmem_limit()


def _choose_tile(n, preferred, align):
    """Largest tile <= preferred that divides n and is a multiple of align,
    falling back to the full dimension (always legal: block == full dim)."""
    if n <= preferred:
        return n
    t = (preferred // align) * align
    while t >= align:
        if n % t == 0:
            return t
        t -= align
    return n


def _softmax_row_tile(V, vmem_limit):
    """Row tile for the fused softmax kernel, sized from the VMEM budget.

    Per row we stream 4 (row, V) bf16 arrays (x, y, p, q), double-buffered,
    plus ~3 f32 row-sized temporaries in-kernel."""
    per_row = V * 16 + V * 12
    tm = int(vmem_limit * 0.6) // max(per_row, 1)
    return int(max(8, min(64, (tm // 8) * 8)))


# -----------------------------------------------------------------------------
# Kernel A+B (fused): student CE stats + softmax, teacher softmax, sum-of-squares.
#   stats output packs [nll, mask, psq, qsq] into one (N, 4) array.
# -----------------------------------------------------------------------------
def _softmax_stats_kernel(x_ref, y_ref, lab_ref, labx_ref,
                          p_ref, q_ref, stats_ref, *, ignore_index):
    # student
    x = x_ref[...].astype(jnp.float32)                     # (TM, V) upcast in-register
    mx = jnp.max(x, axis=-1, keepdims=True)
    ex = jnp.exp(x - mx)
    sx = jnp.sum(ex, axis=-1, keepdims=True)
    p_bf = (ex * pl.reciprocal(sx, approx=True)).astype(jnp.bfloat16)
    p_ref[...] = p_bf
    # psq from the bf16-rounded probs so the C_xx diagonal cancels exactly
    # against the bf16 Gram matmul in Kernel C.
    pr = p_bf.astype(jnp.float32)
    psq = jnp.sum(pr * pr, axis=-1, keepdims=True)
    lse = mx + jnp.log(sx)                                  # (TM, 1)
    lab = lab_ref[...]                                      # (TM, 1) int32
    valid = (lab != ignore_index).astype(jnp.float32)
    nll = (lse - labx_ref[...]) * valid                     # label logit pre-gathered

    # teacher
    y = y_ref[...].astype(jnp.float32)
    my = jnp.max(y, axis=-1, keepdims=True)
    ey = jnp.exp(y - my)
    sy = jnp.sum(ey, axis=-1, keepdims=True)
    q_bf = (ey * pl.reciprocal(sy, approx=True)).astype(jnp.bfloat16)
    q_ref[...] = q_bf
    qr = q_bf.astype(jnp.float32)
    qsq = jnp.sum(qr * qr, axis=-1, keepdims=True)

    stats_ref[:, 0:1] = nll
    stats_ref[:, 1:2] = valid
    stats_ref[:, 2:3] = psq
    stats_ref[:, 3:4] = qsq


def student_teacher_softmax(x, y, lab, lab_logit, ignore_index=IGNORE_INDEX,
                            vmem_limit=_VMEM_LIMIT):
    Np, V = x.shape
    tm = _choose_tile(Np, _softmax_row_tile(V, vmem_limit), 8)
    kernel = functools.partial(_softmax_stats_kernel, ignore_index=ignore_index)
    out_shape = (jax.ShapeDtypeStruct((Np, V), jnp.bfloat16),
                 jax.ShapeDtypeStruct((Np, V), jnp.bfloat16),
                 jax.ShapeDtypeStruct((Np, 4), jnp.float32))
    return pl.pallas_call(
        kernel,
        out_shape=out_shape,
        grid_spec=pltpu.PrefetchScalarGridSpec(
            num_scalar_prefetch=0, grid=(Np // tm,),
            in_specs=[pl.BlockSpec((tm, V), lambda i: (i, 0)),
                      pl.BlockSpec((tm, V), lambda i: (i, 0)),
                      pl.BlockSpec((tm, 1), lambda i: (i, 0)),
                      pl.BlockSpec((tm, 1), lambda i: (i, 0))],
            out_specs=[pl.BlockSpec((tm, V), lambda i: (i, 0)),
                       pl.BlockSpec((tm, V), lambda i: (i, 0)),
                       pl.BlockSpec((tm, 4), lambda i: (i, 0))]),
        compiler_params=pltpu.CompilerParams(
            dimension_semantics=("parallel",),
            vmem_limit_bytes=vmem_limit),
    )(x, y, lab, lab_logit)


# -----------------------------------------------------------------------------
# Kernel C: fused pairwise-cost kernel producing C_xy, C_xx, C_yy in one pass.
#   C[i, j] = sqrt(max(||a_i||^2 + ||b_j||^2 - 2 a_i . b_j, 0))
#   3-D grid (i, j, k): f32 VMEM-scratch accumulators, bf16 MXU matmuls via NT
#   dot_general, bf16 outputs written in the sqrt epilogue on the last k step.
#   Symmetric Gram matmuls (C_xx, C_yy) only run on upper-triangle tiles.
# -----------------------------------------------------------------------------
def _cost3_kernel(p_i_ref, q_i_ref, p_j_ref, q_j_ref,
                  psq_i_ref, qsq_i_ref, psq_j_ref, qsq_j_ref,
                  cxy_ref, cxx_ref, cyy_ref,
                  acc_xy_ref, acc_xx_ref, acc_yy_ref):
    i = pl.program_id(0)
    j = pl.program_id(1)
    k = pl.program_id(2)

    @pl.when(k == 0)
    def _():
        acc_xy_ref[...] = jnp.zeros_like(acc_xy_ref)
        acc_xx_ref[...] = jnp.zeros_like(acc_xx_ref)
        acc_yy_ref[...] = jnp.zeros_like(acc_yy_ref)

    p_i = p_i_ref[...]
    q_j = q_j_ref[...]
    acc_xy_ref[...] += lax.dot_general(p_i, q_j, _NT_DIMS,
                                       preferred_element_type=jnp.float32)

    # C_xx / C_yy are symmetric: skip their Gram matmuls on lower-triangle tiles;
    # those tiles are filled by a cheap transpose+where post-pass in XLA.
    @pl.when(i <= j)
    def _():
        acc_xx_ref[...] += lax.dot_general(p_i, p_j_ref[...], _NT_DIMS,
                                           preferred_element_type=jnp.float32)
        acc_yy_ref[...] += lax.dot_general(q_i_ref[...], q_j, _NT_DIMS,
                                           preferred_element_type=jnp.float32)

    @pl.when(k == pl.num_programs(2) - 1)
    def _():
        psq_i = psq_i_ref[...]        # (tm_n, 1)
        qsq_i = qsq_i_ref[...]        # (tm_n, 1)
        psq_j = psq_j_ref[...]        # (1, tn_n) -- pre-transposed in the wrapper
        qsq_j = qsq_j_ref[...]        # (1, tn_n)
        cxy_ref[...] = jnp.sqrt(jnp.maximum(
            psq_i + qsq_j - 2.0 * acc_xy_ref[...], 0.0)).astype(cxy_ref.dtype)
        cxx_ref[...] = jnp.sqrt(jnp.maximum(
            psq_i + psq_j - 2.0 * acc_xx_ref[...], 0.0)).astype(cxx_ref.dtype)
        cyy_ref[...] = jnp.sqrt(jnp.maximum(
            qsq_i + qsq_j - 2.0 * acc_yy_ref[...], 0.0)).astype(cyy_ref.dtype)


def fused_cost_matrices(p, q, psq, qsq, vmem_limit=_VMEM_LIMIT):
    Np, V = p.shape
    # 256-aligned output tiles up to 1024x1024 -> arithmetic intensity high enough
    # to be MXU-bound on v6e/v7x; vocab chunk <= 512 keeps VMEM well within limits.
    tm_n = _choose_tile(Np, 1024, 256)
    tn_n = _choose_tile(Np, 1024, 256)
    tk = _choose_tile(V, 512, 128)
    psq_t = psq.reshape(1, Np)
    qsq_t = qsq.reshape(1, Np)

    row_map = lambda i, j, k: (i, k)
    col_map = lambda i, j, k: (j, k)
    sq_i_map = lambda i, j, k: (i, 0)
    sq_j_map = lambda i, j, k: (0, j)
    out_spec = pl.BlockSpec((tm_n, tn_n), lambda i, j, k: (i, j))
    out_shape = tuple(jax.ShapeDtypeStruct((Np, Np), jnp.bfloat16) for _ in range(3))

    # TODO(synk): bf16 cost-matrix storage halves Sinkhorn-loop HBM traffic; if
    # distillation distributions become extremely close, validate against f32.
    return pl.pallas_call(
        _cost3_kernel,
        out_shape=out_shape,
        grid_spec=pltpu.PrefetchScalarGridSpec(
            num_scalar_prefetch=0,
            grid=(Np // tm_n, Np // tn_n, V // tk),
            in_specs=[pl.BlockSpec((tm_n, tk), row_map),   # p rows i
                      pl.BlockSpec((tm_n, tk), row_map),   # q rows i
                      pl.BlockSpec((tn_n, tk), col_map),   # p rows j
                      pl.BlockSpec((tn_n, tk), col_map),   # q rows j
                      pl.BlockSpec((tm_n, 1), sq_i_map),   # psq_i
                      pl.BlockSpec((tm_n, 1), sq_i_map),   # qsq_i
                      pl.BlockSpec((1, tn_n), sq_j_map),   # psq_j (transposed)
                      pl.BlockSpec((1, tn_n), sq_j_map)],  # qsq_j (transposed)
            out_specs=[out_spec, out_spec, out_spec],
            scratch_shapes=[pltpu.VMEM((tm_n, tn_n), jnp.float32)] * 3),
        compiler_params=pltpu.CompilerParams(
            dimension_semantics=("parallel", "parallel", "arbitrary"),
            vmem_limit_bytes=vmem_limit),
    )(p, q, p, q, psq, qsq, psq_t, qsq_t)


# -----------------------------------------------------------------------------
# Kernel D: fused log-domain softmin over the four Sinkhorn directions.
#   out[d, i] = -eps * log sum_j exp(h[d, j] - C_d[i, j] / eps)
#   Reads the four bf16 cost matrices directly (no stacked (4,N,N) tensor),
#   upcasts in-register and writes each direction's row tile once.
# -----------------------------------------------------------------------------
def _softmin4_kernel(eps_ref, cxy_ref, cyx_ref, cxx_ref, cyy_ref, h_ref, out_ref):
    eps = eps_ref[0]                                       # f32 scalar from SMEM
    inv_eps = 1.0 / eps
    h = h_ref[...]                                         # (4, N) f32

    def softmin_dir(c_ref, d):
        z = h[d:d + 1, :] - c_ref[...].astype(jnp.float32) * inv_eps   # (tr, N)
        m = jnp.max(z, axis=-1, keepdims=True)
        s = jnp.sum(jnp.exp(z - m), axis=-1, keepdims=True)
        return -eps * (m + jnp.log(s))                     # (tr, 1)

    out_ref[0] = softmin_dir(cxy_ref, 0)
    out_ref[1] = softmin_dir(cyx_ref, 1)
    out_ref[2] = softmin_dir(cxx_ref, 2)
    out_ref[3] = softmin_dir(cyy_ref, 3)


def softmin4(cxy, cyx, cxx, cyy, h4, eps, vmem_limit=_VMEM_LIMIT):
    Np = cxy.shape[0]
    # Smaller row tile on small-VMEM chips (v7x); the reduction dim stays full-row
    # since the bf16 cost blocks keep the footprint modest.
    tr_target = 256 if vmem_limit >= 80 * 1024 * 1024 else 128
    tr = _choose_tile(Np, tr_target, 8)
    eps_arr = jnp.asarray(eps, dtype=jnp.float32).reshape((1,))
    h4 = h4.astype(jnp.float32)
    c_spec = pl.BlockSpec((tr, Np), lambda i: (i, 0))
    out = pl.pallas_call(
        _softmin4_kernel,
        out_shape=jax.ShapeDtypeStruct((4, Np, 1), jnp.float32),
        grid_spec=pltpu.PrefetchScalarGridSpec(
            num_scalar_prefetch=0,
            grid=(Np // tr,),
            in_specs=[pl.BlockSpec(memory_space=pltpu.MemorySpace.SMEM),   # eps
                      c_spec, c_spec, c_spec, c_spec,                      # costs
                      pl.BlockSpec((4, Np), lambda i: (0, 0))],            # h rows
            out_specs=pl.BlockSpec((4, tr, 1), lambda i: (0, i, 0))),
        compiler_params=pltpu.CompilerParams(
            dimension_semantics=("parallel",),
            vmem_limit_bytes=vmem_limit),
    )(eps_arr, cxy, cyx, cxx, cyy, h4)
    return out.reshape(4, Np)


# -----------------------------------------------------------------------------
# Debiased Sinkhorn divergence (log-domain, epsilon-scaling).
# Weighted formulation: zero weights on ignored/padded tokens is mathematically
# equivalent to the PyTorch boolean-mask compaction logits[mask].
# -----------------------------------------------------------------------------
def sinkhorn_divergence(C_xy, C_yx, C_xx, C_yy, a, b, blur=BLUR, scaling=SCALING,
                        n_iters=SINKHORN_ITERS, vmem_limit=_VMEM_LIMIT):
    # TODO(synk): geomloss uses a data-dependent-length epsilon-scaling schedule and
    # multiscale/KeOps backends; here the schedule length is fixed (extra iterations
    # simply run at eps = blur), matching the same mathematical target.
    Np = C_xy.shape[0]
    eps_t = blur  # blur ** p with p = 1
    a_log = jnp.where(a > 0, jnp.log(jnp.maximum(a, 1e-30)), _NEG_LOGWEIGHT)
    b_log = jnp.where(b > 0, jnp.log(jnp.maximum(b, 1e-30)), _NEG_LOGWEIGHT)
    # diameter over valid (weighted) rows only, as in the compacted reference
    pair_valid = (a > 0)[:, None] & (b > 0)[None, :]
    diameter = jnp.maximum(
        jnp.max(jnp.where(pair_valid, C_xy.astype(jnp.float32), 0.0)), eps_t)

    def run4(eps, d_xy, d_yx, d_xx, d_yy):
        h4 = jnp.stack([b_log + d_xy / eps, a_log + d_yx / eps,
                        a_log + d_xx / eps, b_log + d_yy / eps], axis=0)
        r = softmin4(C_xy, C_yx, C_xx, C_yy, h4, eps, vmem_limit)
        return r[0], r[1], r[2], r[3]

    zeros = jnp.zeros((Np,), jnp.float32)
    # init at eps = diameter (as in geomloss)
    f_ab, g_ab, f_aa, g_bb = run4(diameter, zeros, zeros, zeros, zeros)

    def body(k, carry):
        f_ab, g_ab, f_aa, g_bb = carry
        eps = jnp.maximum(diameter * scaling ** (k + 1.0), eps_t)
        ft, gt, faa_t, gbb_t = run4(eps, g_ab, f_ab, f_aa, g_bb)
        return (0.5 * (f_ab + ft), 0.5 * (g_ab + gt),
                0.5 * (f_aa + faa_t), 0.5 * (g_bb + gbb_t))

    f_ab, g_ab, f_aa, g_bb = lax.fori_loop(0, n_iters, body,
                                           (f_ab, g_ab, f_aa, g_bb))

    # final (non-averaged) extrapolation at eps = blur, as in geomloss
    f_ab_l, g_ab_l, f_aa_l, g_bb_l = run4(eps_t, g_ab, f_ab, f_aa, g_bb)

    return jnp.sum(a * (f_ab_l - f_aa_l)) + jnp.sum(b * (g_ab_l - g_bb_l))


# -----------------------------------------------------------------------------
# Full forward pass
# -----------------------------------------------------------------------------
def cross_entropy_wasserstein_loss(logits, labels, teacher_logits,
                                   alpha=ALPHA, ignore_index=IGNORE_INDEX,
                                   num_items_in_batch=None):
    # _shift_inputs
    shift_logits = logits[:, :-1, :]
    shift_labels = labels[:, 1:]
    shift_teacher = teacher_logits[:, :-1, :]
    B, S, V = shift_logits.shape
    St = shift_teacher.shape[1]
    if St < S:  # _adjust_teacher_logits
        pad = jnp.full((B, S - St, V), -10000.0, dtype=shift_teacher.dtype)
        shift_teacher = jnp.concatenate([shift_teacher, pad], axis=1)
    elif St > S:
        shift_teacher = shift_teacher[:, :S, :]

    N = B * S
    # Keep the native (typically bf16) dtype: the kernels upcast in-register,
    # halving HBM input traffic vs. an f32 pre-cast.
    x = shift_logits.reshape(N, V)
    y = shift_teacher.reshape(N, V)
    lab = shift_labels.reshape(N).astype(jnp.int32)

    # label-logit gather hoisted out of the Pallas kernel (VPU-pass saver)
    safe_lab = jnp.where(lab == ignore_index, 0, lab)
    lab_logit = jnp.take_along_axis(x, safe_lab[:, None], axis=1).astype(jnp.float32)

    # Pad rows to an aligned multiple: padded rows carry ignore_index labels and
    # zero Sinkhorn weight, so they are mathematically inert, and they guarantee
    # well-aligned tiles for every kernel (no full-dimension fallback blowups).
    Np = _round_up(N, 8) if N <= 256 else _round_up(N, 256)
    if Np > N:
        pad_rows = Np - N
        x = jnp.concatenate([x, jnp.zeros((pad_rows, V), x.dtype)], axis=0)
        y = jnp.concatenate([y, jnp.zeros((pad_rows, V), y.dtype)], axis=0)
        lab = jnp.concatenate(
            [lab, jnp.full((pad_rows,), ignore_index, jnp.int32)], axis=0)
        lab_logit = jnp.concatenate(
            [lab_logit, jnp.zeros((pad_rows, 1), jnp.float32)], axis=0)
    lab2 = lab.reshape(Np, 1)

    # Kernel A+B (fused)
    p, q, stats = student_teacher_softmax(x, y, lab2, lab_logit, ignore_index)
    nll = stats[:, 0]
    mask = stats[:, 1]
    psq = stats[:, 2:3]
    qsq = stats[:, 3:4]

    # fixed_cross_entropy: mean over valid tokens (or sum / num_items_in_batch)
    n_valid = jnp.sum(mask)
    ce_sum = jnp.sum(nll)
    if num_items_in_batch is None:
        ce_loss = ce_sum / jnp.maximum(n_valid, 1.0)
    else:
        ce_loss = ce_sum / num_items_in_batch

    # Sinkhorn divergence between student/teacher probability point clouds.
    w = mask / jnp.maximum(n_valid, 1.0)              # uniform weights on valid rows
    C_xy, C_xx_raw, C_yy_raw = fused_cost_matrices(p, q, psq, qsq)   # Kernel C
    # Mirror the lower triangle of the symmetric matrices (skipped in the kernel)
    # and build the transposed cross-cost once (bf16, one-time HBM pass).
    upper = jnp.arange(Np)[:, None] <= jnp.arange(Np)[None, :]
    C_xx = jnp.where(upper, C_xx_raw, C_xx_raw.T)
    C_yy = jnp.where(upper, C_yy_raw, C_yy_raw.T)
    C_yx = C_xy.T

    w_loss = sinkhorn_divergence(C_xy, C_yx, C_xx, C_yy, w, w)
    w_loss = jnp.where(n_valid > 0, w_loss, 0.0)

    total = alpha * ce_loss + (1.0 - alpha) * w_loss
    # TODO(synk): wandb/accelerator logging in _log_losses is a host-side side effect
    # with no Pallas equivalent; the loss values are returned instead.
    return total, ce_loss, w_loss


if __name__ == "__main__":
    key = jax.random.PRNGKey(0)
    k1, k2, k3 = jax.random.split(key, 3)

    B, S, V = 2, 9, 512   # small stand-in for VOCAB_SIZE = 128256; N = B*(S-1) = 16
    logits = jax.random.normal(k1, (B, S, V), jnp.float32).astype(jnp.bfloat16)
    teacher_logits = jax.random.normal(k2, (B, S, V), jnp.float32).astype(jnp.bfloat16)
    labels = jax.random.randint(k3, (B, S), 0, V, dtype=jnp.int32)
    labels = labels.at[0, :3].set(IGNORE_INDEX)   # exercise ignore_index path

    fn = jax.jit(cross_entropy_wasserstein_loss)
    total, ce, wl = fn(logits, labels, teacher_logits)
    jax.block_until_ready(total)
    assert total.shape == () and bool(jnp.isfinite(total))
    assert bool(jnp.isfinite(ce)) and bool(jnp.isfinite(wl))
    print("KERNEL_OK")
</pallas_src>

<mosaic_0001>
module attributes {stable_mosaic.version = 11 : i64} {
  func.func @_softmax_stats_kernel(%arg0: i32, %arg1: memref<16x512xbf16, #tpu.memory_space<vmem>>, %arg2: memref<16x512xbf16, #tpu.memory_space<vmem>>, %arg3: memref<16x1xi32, #tpu.memory_space<vmem>>, %arg4: memref<16x1xf32, #tpu.memory_space<vmem>>, %arg5: memref<16x512xbf16, #tpu.memory_space<vmem>>, %arg6: memref<16x512xbf16, #tpu.memory_space<vmem>>, %arg7: memref<16x4xf32, #tpu.memory_space<vmem>>) attributes {dimension_semantics = [#tpu.dimension_semantics<parallel>], iteration_bounds = array<i64: 1>, scalar_prefetch = 0 : i64, scratch_operands = 0 : i64, tpu.core_type = #tpu.core_type<tc>, window_params = [{transform_indices = @transform_0, window_bounds = array<i64: 16, 512>}, {transform_indices = @transform_1, window_bounds = array<i64: 16, 512>}, {transform_indices = @transform_2, window_bounds = array<i64: 16, 1>}, {transform_indices = @transform_3, window_bounds = array<i64: 16, 1>}, {transform_indices = @transform_4, window_bounds = array<i64: 16, 512>}, {transform_indices = @transform_5, window_bounds = array<i64: 16, 512>}, {transform_indices = @transform_6, window_bounds = array<i64: 16, 4>}]} {
    %c0 = arith.constant 0 : index
    %c0_0 = arith.constant 0 : index
    %0 = vector.load %arg1[%c0, %c0_0] : memref<16x512xbf16, #tpu.memory_space<vmem>>, vector<16x512xbf16>
    %1 = arith.extf %0 : vector<16x512xbf16> to vector<16x512xf32>
    %cst = arith.constant dense<0xFF800000> : vector<16xf32>
    %2 = vector.multi_reduction <maximumf>, %1, %cst [1] : vector<16x512xf32> to vector<16xf32>
    %3 = vector.shape_cast %2 : vector<16xf32> to vector<16x1xf32>
    %4 = vector.broadcast %3 : vector<16x1xf32> to vector<16x512xf32>
    %5 = arith.subf %1, %4 : vector<16x512xf32>
    %6 = math.exp %5 : vector<16x512xf32>
    %cst_1 = arith.constant dense<0.000000e+00> : vector<16xf32>
    %7 = vector.multi_reduction <add>, %6, %cst_1 [1] : vector<16x512xf32> to vector<16xf32>
    %8 = vector.shape_cast %7 : vector<16xf32> to vector<16x1xf32>
    %9 = tpu.reciprocal %8 {approx = true} : vector<16x1xf32> -> vector<16x1xf32>
    %10 = vector.broadcast %9 : vector<16x1xf32> to vector<16x512xf32>
    %11 = arith.mulf %6, %10 : vector<16x512xf32>
    %12 = arith.truncf %11 : vector<16x512xf32> to vector<16x512xbf16>
    %c0_2 = arith.constant 0 : index
    %c0_3 = arith.constant 0 : index
    %13 = vector.load %arg5[%c0_2, %c0_3] : memref<16x512xbf16, #tpu.memory_space<vmem>>, vector<16x512xbf16>
    tpu.vector_store %arg5[%c0_2, %c0_3], %12 {strides = array<i32>} : memref<16x512xbf16, #tpu.memory_space<vmem>>, vector<16x512xbf16>,
    %14 = arith.extf %12 : vector<16x512xbf16> to vector<16x512xf32>
    %15 = arith.mulf %14, %14 : vector<16x512xf32>
    %cst_4 = arith.constant dense<0.000000e+00> : vector<16xf32>
    %16 = vector.multi_reduction <add>, %15, %cst_4 [1] : vector<16x512xf32> to vector<16xf32>
    %17 = vector.shape_cast %16 : vector<16xf32> to vector<16x1xf32>
    %18 = math.log %8 : vector<16x1xf32>
    %19 = arith.addf %3, %18 : vector<16x1xf32>
    %c0_5 = arith.constant 0 : index
    %c0_6 = arith.constant 0 : index
    %20 = vector.load %arg3[%c0_5, %c0_6] : memref<16x1xi32, #tpu.memory_space<vmem>>, vector<16x1xi32>
    %c-100_i32 = arith.constant -100 : i32
    %21 = vector.broadcast %c-100_i32 : i32 to vector<16x1xi32>
    %22 = arith.cmpi ne, %20, %21 : vector<16x1xi32>
    %23 = arith.extui %22 : vector<16x1xi1> to vector<16x1xi32>
    %24 = arith.sitofp %23 : vector<16x1xi32> to vector<16x1xf32>
    %c0_7 = arith.constant 0 : index
    %c0_8 = arith.constant 0 : index
    %25 = vector.load %arg4[%c0_7, %c0_8] : memref<16x1xf32, #tpu.memory_space<vmem>>, vector<16x1xf32>
    %26 = arith.subf %19, %25 : vector<16x1xf32>
    %27 = arith.mulf %26, %24 : vector<16x1xf32>
    %c0_9 = arith.constant 0 : index
    %c0_10 = arith.constant 0 : index
    %28 = vector.load %arg2[%c0_9, %c0_10] : memref<16x512xbf16, #tpu.memory_space<vmem>>, vector<16x512xbf16>
    %29 = arith.extf %28 : vector<16x512xbf16> to vector<16x512xf32>
    %cst_11 = arith.constant dense<0xFF800000> : vector<16xf32>
    %30 = vector.multi_reduction <maximumf>, %29, %cst_11 [1] : vector<16x512xf32> to vector<16xf32>
    %31 = vector.shape_cast %30 : vector<16xf32> to vector<16x1xf32>
    %32 = vector.broadcast %31 : vector<16x1xf32> to vector<16x512xf32>
    %33 = arith.subf %29, %32 : vector<16x512xf32>
    %34 = math.exp %33 : vector<16x512xf32>
    %cst_12 = arith.constant dense<0.000000e+00> : vector<16xf32>
    %35 = vector.multi_reduction <add>, %34, %cst_12 [1] : vector<16x512xf32> to vector<16xf32>
    %36 = vector.shape_cast %35 : vector<16xf32> to vector<16x1xf32>
    %37 = tpu.reciprocal %36 {approx = true} : vector<16x1xf32> -> vector<16x1xf32>
    %38 = vector.broadcast %37 : vector<16x1xf32> to vector<16x512xf32>
    %39 = arith.mulf %34, %38 : vector<16x512xf32>
    %40 = arith.truncf %39 : vector<16x512xf32> to vector<16x512xbf16>
    %c0_13 = arith.constant 0 : index
    %c0_14 = arith.constant 0 : index
    %41 = vector.load %arg6[%c0_13, %c0_14] : memref<16x512xbf16, #tpu.memory_space<vmem>>, vector<16x512xbf16>
    tpu.vector_store %arg6[%c0_13, %c0_14], %40 {strides = array<i32>} : memref<16x512xbf16, #tpu.memory_space<vmem>>, vector<16x512xbf16>,
    %42 = arith.extf %40 : vector<16x512xbf16> to vector<16x512xf32>
    %43 = arith.mulf %42, %42 : vector<16x512xf32>
    %cst_15 = arith.constant dense<0.000000e+00> : vector<16xf32>
    %44 = vector.multi_reduction <add>, %43, %cst_15 [1] : vector<16x512xf32> to vector<16xf32>
    %45 = vector.shape_cast %44 : vector<16xf32> to vector<16x1xf32>
    %c0_16 = arith.constant 0 : index
    %c0_17 = arith.constant 0 : index
    %46 = vector.load %arg7[%c0_16, %c0_17] : memref<16x4xf32, #tpu.memory_space<vmem>>, vector<16x1xf32>
    tpu.vector_store %arg7[%c0_16, %c0_17], %27 {strides = array<i32>} : memref<16x4xf32, #tpu.memory_space<vmem>>, vector<16x1xf32>,
    %c0_18 = arith.constant 0 : index
    %c1 = arith.constant 1 : index
    %47 = vector.load %arg7[%c0_18, %c1] : memref<16x4xf32, #tpu.memory_space<vmem>>, vector<16x1xf32>
    tpu.vector_store %arg7[%c0_18, %c1], %24 {strides = array<i32>} : memref<16x4xf32, #tpu.memory_space<vmem>>, vector<16x1xf32>,
    %c0_19 = arith.constant 0 : index
    %c2 = arith.constant 2 : index
    %48 = vector.load %arg7[%c0_19, %c2] : memref<16x4xf32, #tpu.memory_space<vmem>>, vector<16x1xf32>
    tpu.vector_store %arg7[%c0_19, %c2], %17 {strides = array<i32>} : memref<16x4xf32, #tpu.memory_space<vmem>>, vector<16x1xf32>,
    %c0_20 = arith.constant 0 : index
    %c3 = arith.constant 3 : index
    %49 = vector.load %arg7[%c0_20, %c3] : memref<16x4xf32, #tpu.memory_space<vmem>>, vector<16x1xf32>
    tpu.vector_store %arg7[%c0_20, %c3], %45 {strides = array<i32>} : memref<16x4xf32, #tpu.memory_space<vmem>>, vector<16x1xf32>,
    return
  }
  func.func @transform_0(%arg0: i32) -> (i32, i32) {
    %c0_i32 = arith.constant 0 : i32
    %c0_i32_0 = arith.constant 0 : i32
    return %arg0, %c0_i32 : i32, i32
  }
  func.func @transform_1(%arg0: i32) -> (i32, i32) {
    %c0_i32 = arith.constant 0 : i32
    %c0_i32_0 = arith.constant 0 : i32
    return %arg0, %c0_i32 : i32, i32
  }
  func.func @transform_2(%arg0: i32) -> (i32, i32) {
    %c0_i32 = arith.constant 0 : i32
    %c0_i32_0 = arith.constant 0 : i32
    return %arg0, %c0_i32 : i32, i32
  }
  func.func @transform_3(%arg0: i32) -> (i32, i32) {
    %c0_i32 = arith.constant 0 : i32
    %c0_i32_0 = arith.constant 0 : i32
    return %arg0, %c0_i32 : i32, i32
  }
  func.func @transform_4(%arg0: i32) -> (i32, i32) {
    %c0_i32 = arith.constant 0 : i32
    %c0_i32_0 = arith.constant 0 : i32
    return %arg0, %c0_i32 : i32, i32
  }
  func.func @transform_5(%arg0: i32) -> (i32, i32) {
    %c0_i32 = arith.constant 0 : i32
    %c0_i32_0 = arith.constant 0 : i32
    return %arg0, %c0_i32 : i32, i32
  }
  func.func @transform_6(%arg0: i32) -> (i32, i32) {
    %c0_i32 = arith.constant 0 : i32
    %c0_i32_0 = arith.constant 0 : i32
    return %arg0, %c0_i32 : i32, i32
  }
}

module attributes {stable_mosaic.version = 11 : i64} {
  func.func @_cost3_kernel(%arg0: i32, %arg1: i32, %arg2: i32, %arg3: memref<16x512xbf16, #tpu.memory_space<vmem>>, %arg4: memref<16x512xbf16, #tpu.memory_space<vmem>>, %arg5: memref<16x512xbf16, #tpu.memory_space<vmem>>, %arg6: memref<16x512xbf16, #tpu.memory_space<vmem>>, %arg7: memref<16x1xf32, #tpu.memory_space<vmem>>, %arg8: memref<16x1xf32, #tpu.memory_space<vmem>>, %arg9: memref<1x16xf32, #tpu.memory_space<vmem>>, %arg10: memref<1x16xf32, #tpu.memory_space<vmem>>, %arg11: memref<16x16xbf16, #tpu.memory_space<vmem>>, %arg12: memref<16x16xbf16, #tpu.memory_space<vmem>>, %arg13: memref<16x16xbf16, #tpu.memory_space<vmem>>, %arg14: memref<16x16xf32, #tpu.memory_space<vmem>>, %arg15: memref<16x16xf32, #tpu.memory_space<vmem>>, %arg16: memref<16x16xf32, #tpu.memory_space<vmem>>) attributes {dimension_semantics = [#tpu.dimension_semantics<parallel>, #tpu.dimension_semantics<parallel>, #tpu.dimension_semantics<arbitrary>], iteration_bounds = array<i64: 1, 1, 1>, scalar_prefetch = 0 : i64, scratch_operands = 3 : i64, tpu.core_type = #tpu.core_type<tc>, window_params = [{transform_indices = @transform_0, window_bounds = array<i64: 16, 512>}, {transform_indices = @transform_1, window_bounds = array<i64: 16, 512>}, {transform_indices = @transform_2, window_bounds = array<i64: 16, 512>}, {transform_indices = @transform_3, window_bounds = array<i64: 16, 512>}, {transform_indices = @transform_4, window_bounds = array<i64: 16, 1>}, {transform_indices = @transform_5, window_bounds = array<i64: 16, 1>}, {transform_indices = @transform_6, window_bounds = array<i64: 1, 16>}, {transform_indices = @transform_7, window_bounds = array<i64: 1, 16>}, {transform_indices = @transform_8, window_bounds = array<i64: 16, 16>}, {transform_indices = @transform_9, window_bounds = array<i64: 16, 16>}, {transform_indices = @transform_10, window_bounds = array<i64: 16, 16>}]} {
    %c0_i32 = arith.constant 0 : i32
    %0 = arith.cmpi eq, %arg2, %c0_i32 : i32
    %1 = arith.extui %0 : i1 to i32
    %c0_i32_0 = arith.constant 0 : i32
    %2 = arith.cmpi ne, %1, %c0_i32_0 : i32
    scf.if %2 {
      %cst_11 = arith.constant 0.000000e+00 : f32
      %15 = vector.broadcast %cst_11 : f32 to vector<16x16xf32>
      %c0_12 = arith.constant 0 : index
      %c0_13 = arith.constant 0 : index
      %16 = vector.load %arg14[%c0_12, %c0_13] : memref<16x16xf32, #tpu.memory_space<vmem>>, vector<16x16xf32>
      tpu.vector_store %arg14[%c0_12, %c0_13], %15 {strides = array<i32>} : memref<16x16xf32, #tpu.memory_space<vmem>>, vector<16x16xf32>,
      %cst_14 = arith.constant 0.000000e+00 : f32
      %17 = vector.broadcast %cst_14 : f32 to vector<16x16xf32>
      %c0_15 = arith.constant 0 : index
      %c0_16 = arith.constant 0 : index
      %18 = vector.load %arg15[%c0_15, %c0_16] : memref<16x16xf32, #tpu.memory_space<vmem>>, vector<16x16xf32>
      tpu.vector_store %arg15[%c0_15, %c0_16], %17 {strides = array<i32>} : memref<16x16xf32, #tpu.memory_space<vmem>>, vector<16x16xf32>,
      %cst_17 = arith.constant 0.000000e+00 : f32
      %19 = vector.broadcast %cst_17 : f32 to vector<16x16xf32>
      %c0_18 = arith.constant 0 : index
      %c0_19 = arith.constant 0 : index
      %20 = vector.load %arg16[%c0_18, %c0_19] : memref<16x16xf32, #tpu.memory_space<vmem>>, vector<16x16xf32>
      tpu.vector_store %arg16[%c0_18, %c0_19], %19 {strides = array<i32>} : memref<16x16xf32, #tpu.memory_space<vmem>>, vector<16x16xf32>,
    } else {
    }
    %c0 = arith.constant 0 : index
    %c0_1 = arith.constant 0 : index
    %3 = vector.load %arg3[%c0, %c0_1] : memref<16x512xbf16, #tpu.memory_space<vmem>>, vector<16x512xbf16>
    %c0_2 = arith.constant 0 : index
    %c0_3 = arith.constant 0 : index
    %4 = vector.load %arg6[%c0_2, %c0_3] : memref<16x512xbf16, #tpu.memory_space<vmem>>, vector<16x512xbf16>
    %c0_4 = arith.constant 0 : index
    %c0_5 = arith.constant 0 : index
    %5 = vector.load %arg14[%c0_4, %c0_5] : memref<16x16xf32, #tpu.memory_space<vmem>>, vector<16x16xf32>
    %cst = arith.constant dense<0.000000e+00> : vector<16x16xf32>
    %6 = tpu.matmul %3, %4, %cst {dimension_numbers = #tpu.dot_dimension_numbers<[1], [1], [0], [0], [0, 0, 1, 0], [], []>} : vector<16x512xbf16>, vector<16x512xbf16>, vector<16x16xf32> -> vector<16x16xf32>
    %7 = arith.addf %5, %6 : vector<16x16xf32>
    %c0_6 = arith.constant 0 : index
    %c0_7 = arith.constant 0 : index
    %8 = vector.load %arg14[%c0_6, %c0_7] : memref<16x16xf32, #tpu.memory_space<vmem>>, vector<16x16xf32>
    tpu.vector_store %arg14[%c0_6, %c0_7], %7 {strides = array<i32>} : memref<16x16xf32, #tpu.memory_space<vmem>>, vector<16x16xf32>,
    %9 = arith.cmpi sle, %arg0, %arg1 : i32
    %10 = arith.extui %9 : i1 to i32
    %c0_i32_8 = arith.constant 0 : i32
    %11 = arith.cmpi ne, %10, %c0_i32_8 : i32
    scf.if %11 {
      %c0_11 = arith.constant 0 : index
      %c0_12 = arith.constant 0 : index
      %15 = vector.load %arg15[%c0_11, %c0_12] : memref<16x16xf32, #tpu.memory_space<vmem>>, vector<16x16xf32>
      %c0_13 = arith.constant 0 : index
      %c0_14 = arith.constant 0 : index
      %16 = vector.load %arg5[%c0_13, %c0_14] : memref<16x512xbf16, #tpu.memory_space<vmem>>, vector<16x512xbf16>
      %cst_15 = arith.constant dense<0.000000e+00> : vector<16x16xf32>
      %17 = tpu.matmul %3, %16, %cst_15 {dimension_numbers = #tpu.dot_dimension_numbers<[1], [1], [0], [0], [0, 0, 1, 0], [], []>} : vector<16x512xbf16>, vector<16x512xbf16>, vector<16x16xf32> -> vector<16x16xf32>
      %18 = arith.addf %15, %17 : vector<16x16xf32>
      %c0_16 = arith.constant 0 : index
      %c0_17 = arith.constant 0 : index
      %19 = vector.load %arg15[%c0_16, %c0_17] : memref<16x16xf32, #tpu.memory_space<vmem>>, vector<16x16xf32>
      tpu.vector_store %arg15[%c0_16, %c0_17], %18 {strides = array<i32>} : memref<16x16xf32, #tpu.memory_space<vmem>>, vector<16x16xf32>,
      %c0_18 = arith.constant 0 : index
      %c0_19 = arith.constant 0 : index
      %20 = vector.load %arg16[%c0_18, %c0_19] : memref<16x16xf32, #tpu.memory_space<vmem>>, vector<16x16xf32>
      %c0_20 = arith.constant 0 : index
      %c0_21 = arith.constant 0 : index
      %21 = vector.load %arg4[%c0_20, %c0_21] : memref<16x512xbf16, #tpu.memory_space<vmem>>, vector<16x512xbf16>
      %cst_22 = arith.constant dense<0.000000e+00> : vector<16x16xf32>
      %22 = tpu.matmul %21, %4, %cst_22 {dimension_numbers = #tpu.dot_dimension_numbers<[1], [1], [0], [0], [0, 0, 1, 0], [], []>} : vector<16x512xbf16>, vector<16x512xbf16>, vector<16x16xf32> -> vector<16x16xf32>
      %23 = arith.addf %20, %22 : vector<16x16xf32>
      %c0_23 = arith.constant 0 : index
      %c0_24 = arith.constant 0 : index
      %24 = vector.load %arg16[%c0_23, %c0_24] : memref<16x16xf32, #tpu.memory_space<vmem>>, vector<16x16xf32>
      tpu.vector_store %arg16[%c0_23, %c0_24], %23 {strides = array<i32>} : memref<16x16xf32, #tpu.memory_space<vmem>>, vector<16x16xf32>,
    } else {
    }
    %c0_i32_9 = arith.constant 0 : i32
    %12 = arith.cmpi eq, %arg2, %c0_i32_9 : i32
    %13 = arith.extui %12 : i1 to i32
    %c0_i32_10 = arith.constant 0 : i32
    %14 = arith.cmpi ne, %13, %c0_i32_10 : i32
    scf.if %14 {
      %c0_11 = arith.constant 0 : index
      %c0_12 = arith.constant 0 : index
      %15 = vector.load %arg7[%c0_11, %c0_12] : memref<16x1xf32, #tpu.memory_space<vmem>>, vector<16x1xf32>
      %c0_13 = arith.constant 0 : index
      %c0_14 = arith.constant 0 : index
      %16 = vector.load %arg8[%c0_13, %c0_14] : memref<16x1xf32, #tpu.memory_space<vmem>>, vector<16x1xf32>
      %c0_15 = arith.constant 0 : index
      %c0_16 = arith.constant 0 : index
      %17 = vector.load %arg9[%c0_15, %c0_16] : memref<1x16xf32, #tpu.memory_space<vmem>>, vector<1x16xf32>
      %c0_17 = arith.constant 0 : index
      %c0_18 = arith.constant 0 : index
      %18 = vector.load %arg10[%c0_17, %c0_18] : memref<1x16xf32, #tpu.memory_space<vmem>>, vector<1x16xf32>
      %19 = vector.broadcast %15 : vector<16x1xf32> to vector<16x16xf32>
      %20 = vector.broadcast %18 : vector<1x16xf32> to vector<16x16xf32>
      %21 = arith.addf %19, %20 : vector<16x16xf32>
      %c0_19 = arith.constant 0 : index
      %c0_20 = arith.constant 0 : index
      %22 = vector.load %arg14[%c0_19, %c0_20] : memref<16x16xf32, #tpu.memory_space<vmem>>, vector<16x16xf32>
      %cst_21 = arith.constant 2.000000e+00 : f32
      %23 = vector.broadcast %cst_21 : f32 to vector<16x16xf32>
      %24 = arith.mulf %23, %22 : vector<16x16xf32>
      %25 = arith.subf %21, %24 : vector<16x16xf32>
      %cst_22 = arith.constant 0.000000e+00 : f32
      %26 = vector.broadcast %cst_22 : f32 to vector<16x16xf32>
      %27 = arith.maximumf %25, %26 : vector<16x16xf32>
      %28 = math.sqrt %27 : vector<16x16xf32>
      %29 = arith.truncf %28 : vector<16x16xf32> to vector<16x16xbf16>
      %c0_23 = arith.constant 0 : index
      %c0_24 = arith.constant 0 : index
      %30 = vector.load %arg11[%c0_23, %c0_24] : memref<16x16xbf16, #tpu.memory_space<vmem>>, vector<16x16xbf16>
      tpu.vector_store %arg11[%c0_23, %c0_24], %29 {strides = array<i32>} : memref<16x16xbf16, #tpu.memory_space<vmem>>, vector<16x16xbf16>,
      %31 = vector.broadcast %15 : vector<16x1xf32> to vector<16x16xf32>
      %32 = vector.broadcast %17 : vector<1x16xf32> to vector<16x16xf32>
      %33 = arith.addf %31, %32 : vector<16x16xf32>
      %c0_25 = arith.constant 0 : index
      %c0_26 = arith.constant 0 : index
      %34 = vector.load %arg15[%c0_25, %c0_26] : memref<16x16xf32, #tpu.memory_space<vmem>>, vector<16x16xf32>
      %cst_27 = arith.constant 2.000000e+00 : f32
      %35 = vector.broadcast %cst_27 : f32 to vector<16x16xf32>
      %36 = arith.mulf %35, %34 : vector<16x16xf32>
      %37 = arith.subf %33, %36 : vector<16x16xf32>
      %cst_28 = arith.constant 0.000000e+00 : f32
      %38 = vector.broadcast %cst_28 : f32 to vector<16x16xf32>
      %39 = arith.maximumf %37, %38 : vector<16x16xf32>
      %40 = math.sqrt %39 : vector<16x16xf32>
      %41 = arith.truncf %40 : vector<16x16xf32> to vector<16x16xbf16>
      %c0_29 = arith.constant 0 : index
      %c0_30 = arith.constant 0 : index
      %42 = vector.load %arg12[%c0_29, %c0_30] : memref<16x16xbf16, #tpu.memory_space<vmem>>, vector<16x16xbf16>
      tpu.vector_store %arg12[%c0_29, %c0_30], %41 {strides = array<i32>} : memref<16x16xbf16, #tpu.memory_space<vmem>>, vector<16x16xbf16>,
      %43 = vector.broadcast %16 : vector<16x1xf32> to vector<16x16xf32>
      %44 = vector.broadcast %18 : vector<1x16xf32> to vector<16x16xf32>
      %45 = arith.addf %43, %44 : vector<16x16xf32>
      %c0_31 = arith.constant 0 : index
      %c0_32 = arith.constant 0 : index
      %46 = vector.load %arg16[%c0_31, %c0_32] : memref<16x16xf32, #tpu.memory_space<vmem>>, vector<16x16xf32>
      %cst_33 = arith.constant 2.000000e+00 : f32
      %47 = vector.broadcast %cst_33 : f32 to vector<16x16xf32>
      %48 = arith.mulf %47, %46 : vector<16x16xf32>
      %49 = arith.subf %45, %48 : vector<16x16xf32>
      %cst_34 = arith.constant 0.000000e+00 : f32
      %50 = vector.broadcast %cst_34 : f32 to vector<16x16xf32>
      %51 = arith.maximumf %49, %50 : vector<16x16xf32>
      %52 = math.sqrt %51 : vector<16x16xf32>
      %53 = arith.truncf %52 : vector<16x16xf32> to vector<16x16xbf16>
      %c0_35 = arith.constant 0 : index
      %c0_36 = arith.constant 0 : index
      %54 = vector.load %arg13[%c0_35, %c0_36] : memref<16x16xbf16, #tpu.memory_space<vmem>>, vector<16x16xbf16>
      tpu.vector_store %arg13[%c0_35, %c0_36], %53 {strides = array<i32>} : memref<16x16xbf16, #tpu.memory_space<vmem>>, vector<16x16xbf16>,
    } else {
    }
    return
  }
  func.func @transform_0(%arg0: i32, %arg1: i32, %arg2: i32) -> (i32, i32) {
    %c0_i32 = arith.constant 0 : i32
    return %arg0, %arg2 : i32, i32
  }
  func.func @transform_1(%arg0: i32, %arg1: i32, %arg2: i32) -> (i32, i32) {
    %c0_i32 = arith.constant 0 : i32
    return %arg0, %arg2 : i32, i32
  }
  func.func @transform_2(%arg0: i32, %arg1: i32, %arg2: i32) -> (i32, i32) {
    %c0_i32 = arith.constant 0 : i32
    return %arg1, %arg2 : i32, i32
  }
  func.func @transform_3(%arg0: i32, %arg1: i32, %arg2: i32) -> (i32, i32) {
    %c0_i32 = arith.constant 0 : i32
    return %arg1, %arg2 : i32, i32
  }
  func.func @transform_4(%arg0: i32, %arg1: i32, %arg2: i32) -> (i32, i32) {
    %c0_i32 = arith.constant 0 : i32
    %c0_i32_0 = arith.constant 0 : i32
    return %arg0, %c0_i32 : i32, i32
  }
  func.func @transform_5(%arg0: i32, %arg1: i32, %arg2: i32) -> (i32, i32) {
    %c0_i32 = arith.constant 0 : i32
    %c0_i32_0 = arith.constant 0 : i32
    return %arg0, %c0_i32 : i32, i32
  }
  func.func @transform_6(%arg0: i32, %arg1: i32, %arg2: i32) -> (i32, i32) {
    %c0_i32 = arith.constant 0 : i32
    %c0_i32_0 = arith.constant 0 : i32
    return %c0_i32, %arg1 : i32, i32
  }
  func.func @transform_7(%arg0: i32, %arg1: i32, %arg2: i32) -> (i32, i32) {
    %c0_i32 = arith.constant 0 : i32
    %c0_i32_0 = arith.constant 0 : i32
    return %c0_i32, %arg1 : i32, i32
  }
  func.func @transform_8(%arg0: i32, %arg1: i32, %arg2: i32) -> (i32, i32) {
    %c0_i32 = arith.constant 0 : i32
    return %arg0, %arg1 : i32, i32
  }
  func.func @transform_9(%arg0: i32, %arg1: i32, %arg2: i32) -> (i32, i32) {
    %c0_i32 = arith.constant 0 : i32
    return %arg0, %arg1 : i32, i32
  }
  func.func @transform_10(%arg0: i32, %arg1: i32, %arg2: i32) -> (i32, i32) {
    %c0_i32 = arith.constant 0 : i32
    return %arg0, %arg1 : i32, i32
  }
}

module attributes {stable_mosaic.version = 11 : i64} {
  func.func @_softmin4_kernel(%arg0: i32, %arg1: memref<1xf32, #tpu.memory_space<smem>>, %arg2: memref<16x16xbf16, #tpu.memory_space<vmem>>, %arg3: memref<16x16xbf16, #tpu.memory_space<vmem>>, %arg4: memref<16x16xbf16, #tpu.memory_space<vmem>>, %arg5: memref<16x16xbf16, #tpu.memory_space<vmem>>, %arg6: memref<4x16xf32, #tpu.memory_space<vmem>>, %arg7: memref<4x16x1xf32, #tpu.memory_space<vmem>>) attributes {dimension_semantics = [#tpu.dimension_semantics<parallel>], iteration_bounds = array<i64: 1>, scalar_prefetch = 0 : i64, scratch_operands = 0 : i64, tpu.core_type = #tpu.core_type<tc>, window_params = [{transform_indices = @transform_0, window_bounds = array<i64: 1>}, {transform_indices = @transform_1, window_bounds = array<i64: 16, 16>}, {transform_indices = @transform_2, window_bounds = array<i64: 16, 16>}, {transform_indices = @transform_3, window_bounds = array<i64: 16, 16>}, {transform_indices = @transform_4, window_bounds = array<i64: 16, 16>}, {pipeline_mode = #tpu.pipeline_mode<synchronous>, transform_indices = @transform_5, window_bounds = array<i64: 4, 16>}, {transform_indices = @transform_6, window_bounds = array<i64: 4, 16, 1>}]} {
    %c0 = arith.constant 0 : index
    %0 = memref.load %arg1[%c0] : memref<1xf32, #tpu.memory_space<smem>>
    %cst = arith.constant 1.000000e+00 : f32
    %1 = arith.divf %cst, %0 : f32
    %c0_0 = arith.constant 0 : index
    %c0_1 = arith.constant 0 : index
    %2 = vector.load %arg6[%c0_0, %c0_1] : memref<4x16xf32, #tpu.memory_space<vmem>>, vector<4x16xf32>
    %3 = vector.extract_strided_slice %2 {offsets = [0, 0], sizes = [1, 16], strides = [1, 1]} : vector<4x16xf32> to vector<1x16xf32>
    %c0_2 = arith.constant 0 : index
    %c0_3 = arith.constant 0 : index
    %4 = vector.load %arg2[%c0_2, %c0_3] : memref<16x16xbf16, #tpu.memory_space<vmem>>, vector<16x16xbf16>
    %5 = arith.extf %4 : vector<16x16xbf16> to vector<16x16xf32>
    %6 = vector.broadcast %1 : f32 to vector<16x16xf32>
    %7 = arith.mulf %5, %6 : vector<16x16xf32>
    %8 = vector.broadcast %3 : vector<1x16xf32> to vector<16x16xf32>
    %9 = arith.subf %8, %7 : vector<16x16xf32>
    %cst_4 = arith.constant dense<0xFF800000> : vector<16xf32>
    %10 = vector.multi_reduction <maximumf>, %9, %cst_4 [1] : vector<16x16xf32> to vector<16xf32>
    %11 = vector.shape_cast %10 : vector<16xf32> to vector<16x1xf32>
    %12 = vector.broadcast %11 : vector<16x1xf32> to vector<16x16xf32>
    %13 = arith.subf %9, %12 : vector<16x16xf32>
    %14 = math.exp %13 : vector<16x16xf32>
    %cst_5 = arith.constant dense<0.000000e+00> : vector<16xf32>
    %15 = vector.multi_reduction <add>, %14, %cst_5 [1] : vector<16x16xf32> to vector<16xf32>
    %16 = vector.shape_cast %15 : vector<16xf32> to vector<16x1xf32>
    %cst_6 = arith.constant 0.000000e+00 : f32
    %17 = arith.subf %cst_6, %0 : f32
    %18 = math.log %16 : vector<16x1xf32>
    %19 = arith.addf %11, %18 : vector<16x1xf32>
    %20 = vector.broadcast %17 : f32 to vector<16x1xf32>
    %21 = arith.mulf %20, %19 : vector<16x1xf32>
    %c0_7 = arith.constant 0 : index
    %c0_8 = arith.constant 0 : index
    %c0_9 = arith.constant 0 : index
    %22 = vector.load %arg7[%c0_7, %c0_8, %c0_9] : memref<4x16x1xf32, #tpu.memory_space<vmem>>, vector<1x16x1xf32>
    %23 = vector.shape_cast %22 : vector<1x16x1xf32> to vector<16x1xf32>
    %24 = vector.shape_cast %21 : vector<16x1xf32> to vector<1x16x1xf32>
    tpu.vector_store %arg7[%c0_7, %c0_8, %c0_9], %24 {strides = array<i32>} : memref<4x16x1xf32, #tpu.memory_space<vmem>>, vector<1x16x1xf32>,
    %25 = vector.extract_strided_slice %2 {offsets = [1, 0], sizes = [1, 16], strides = [1, 1]} : vector<4x16xf32> to vector<1x16xf32>
    %c0_10 = arith.constant 0 : index
    %c0_11 = arith.constant 0 : index
    %26 = vector.load %arg3[%c0_10, %c0_11] : memref<16x16xbf16, #tpu.memory_space<vmem>>, vector<16x16xbf16>
    %27 = arith.extf %26 : vector<16x16xbf16> to vector<16x16xf32>
    %28 = vector.broadcast %1 : f32 to vector<16x16xf32>
    %29 = arith.mulf %27, %28 : vector<16x16xf32>
    %30 = vector.broadcast %25 : vector<1x16xf32> to vector<16x16xf32>
    %31 = arith.subf %30, %29 : vector<16x16xf32>
    %cst_12 = arith.constant dense<0xFF800000> : vector<16xf32>
    %32 = vector.multi_reduction <maximumf>, %31, %cst_12 [1] : vector<16x16xf32> to vector<16xf32>
    %33 = vector.shape_cast %32 : vector<16xf32> to vector<16x1xf32>
    %34 = vector.broadcast %33 : vector<16x1xf32> to vector<16x16xf32>
    %35 = arith.subf %31, %34 : vector<16x16xf32>
    %36 = math.exp %35 : vector<16x16xf32>
    %cst_13 = arith.constant dense<0.000000e+00> : vector<16xf32>
    %37 = vector.multi_reduction <add>, %36, %cst_13 [1] : vector<16x16xf32> to vector<16xf32>
    %38 = vector.shape_cast %37 : vector<16xf32> to vector<16x1xf32>
    %cst_14 = arith.constant 0.000000e+00 : f32
    %39 = arith.subf %cst_14, %0 : f32
    %40 = math.log %38 : vector<16x1xf32>
    %41 = arith.addf %33, %40 : vector<16x1xf32>
    %42 = vector.broadcast %39 : f32 to vector<16x1xf32>
    %43 = arith.mulf %42, %41 : vector<16x1xf32>
    %c1 = arith.constant 1 : index
    %c0_15 = arith.constant 0 : index
    %c0_16 = arith.constant 0 : index
    %44 = vector.load %arg7[%c1, %c0_15, %c0_16] : memref<4x16x1xf32, #tpu.memory_space<vmem>>, vector<1x16x1xf32>
    %45 = vector.shape_cast %44 : vector<1x16x1xf32> to vector<16x1xf32>
    %46 = vector.shape_cast %43 : vector<16x1xf32> to vector<1x16x1xf32>
    tpu.vector_store %arg7[%c1, %c0_15, %c0_16], %46 {strides = array<i32>} : memref<4x16x1xf32, #tpu.memory_space<vmem>>, vector<1x16x1xf32>,
    %47 = vector.extract_strided_slice %2 {offsets = [2, 0], sizes = [1, 16], strides = [1, 1]} : vector<4x16xf32> to vector<1x16xf32>
    %c0_17 = arith.constant 0 : index
    %c0_18 = arith.constant 0 : index
    %48 = vector.load %arg4[%c0_17, %c0_18] : memref<16x16xbf16, #tpu.memory_space<vmem>>, vector<16x16xbf16>
    %49 = arith.extf %48 : vector<16x16xbf16> to vector<16x16xf32>
    %50 = vector.broadcast %1 : f32 to vector<16x16xf32>
    %51 = arith.mulf %49, %50 : vector<16x16xf32>
    %52 = vector.broadcast %47 : vector<1x16xf32> to vector<16x16xf32>
    %53 = arith.subf %52, %51 : vector<16x16xf32>
    %cst_19 = arith.constant dense<0xFF800000> : vector<16xf32>
    %54 = vector.multi_reduction <maximumf>, %53, %cst_19 [1] : vector<16x16xf32> to vector<16xf32>
    %55 = vector.shape_cast %54 : vector<16xf32> to vector<16x1xf32>
    %56 = vector.broadcast %55 : vector<16x1xf32> to vector<16x16xf32>
    %57 = arith.subf %53, %56 : vector<16x16xf32>
    %58 = math.exp %57 : vector<16x16xf32>
    %cst_20 = arith.constant dense<0.000000e+00> : vector<16xf32>
    %59 = vector.multi_reduction <add>, %58, %cst_20 [1] : vector<16x16xf32> to vector<16xf32>
    %60 = vector.shape_cast %59 : vector<16xf32> to vector<16x1xf32>
    %cst_21 = arith.constant 0.000000e+00 : f32
    %61 = arith.subf %cst_21, %0 : f32
    %62 = math.log %60 : vector<16x1xf32>
    %63 = arith.addf %55, %62 : vector<16x1xf32>
    %64 = vector.broadcast %61 : f32 to vector<16x1xf32>
    %65 = arith.mulf %64, %63 : vector<16x1xf32>
    %c2 = arith.constant 2 : index
    %c0_22 = arith.constant 0 : index
    %c0_23 = arith.constant 0 : index
    %66 = vector.load %arg7[%c2, %c0_22, %c0_23] : memref<4x16x1xf32, #tpu.memory_space<vmem>>, vector<1x16x1xf32>
    %67 = vector.shape_cast %66 : vector<1x16x1xf32> to vector<16x1xf32>
    %68 = vector.shape_cast %65 : vector<16x1xf32> to vector<1x16x1xf32>
    tpu.vector_store %arg7[%c2, %c0_22, %c0_23], %68 {strides = array<i32>} : memref<4x16x1xf32, #tpu.memory_space<vmem>>, vector<1x16x1xf32>,
    %69 = vector.extract_strided_slice %2 {offsets = [3, 0], sizes = [1, 16], strides = [1, 1]} : vector<4x16xf32> to vector<1x16xf32>
    %c0_24 = arith.constant 0 : index
    %c0_25 = arith.constant 0 : index
    %70 = vector.load %arg5[%c0_24, %c0_25] : memref<16x16xbf16, #tpu.memory_space<vmem>>, vector<16x16xbf16>
    %71 = arith.extf %70 : vector<16x16xbf16> to vector<16x16xf32>
    %72 = vector.broadcast %1 : f32 to vector<16x16xf32>
    %73 = arith.mulf %71, %72 : vector<16x16xf32>
    %74 = vector.broadcast %69 : vector<1x16xf32> to vector<16x16xf32>
    %75 = arith.subf %74, %73 : vector<16x16xf32>
    %cst_26 = arith.constant dense<0xFF800000> : vector<16xf32>
    %76 = vector.multi_reduction <maximumf>, %75, %cst_26 [1] : vector<16x16xf32> to vector<16xf32>
    %77 = vector.shape_cast %76 : vector<16xf32> to vector<16x1xf32>
    %78 = vector.broadcast %77 : vector<16x1xf32> to vector<16x16xf32>
    %79 = arith.subf %75, %78 : vector<16x16xf32>
    %80 = math.exp %79 : vector<16x16xf32>
    %cst_27 = arith.constant dense<0.000000e+00> : vector<16xf32>
    %81 = vector.multi_reduction <add>, %80, %cst_27 [1] : vector<16x16xf32> to vector<16xf32>
    %82 = vector.shape_cast %81 : vector<16xf32> to vector<16x1xf32>
    %cst_28 = arith.constant 0.000000e+00 : f32
    %83 = arith.subf %cst_28, %0 : f32
    %84 = math.log %82 : vector<16x1xf32>
    %85 = arith.addf %77, %84 : vector<16x1xf32>
    %86 = vector.broadcast %83 : f32 to vector<16x1xf32>
    %87 = arith.mulf %86, %85 : vector<16x1xf32>
    %c3 = arith.constant 3 : index
    %c0_29 = arith.constant 0 : index
    %c0_30 = arith.constant 0 : index
    %88 = vector.load %arg7[%c3, %c0_29, %c0_30] : memref<4x16x1xf32, #tpu.memory_space<vmem>>, vector<1x16x1xf32>
    %89 = vector.shape_cast %88 : vector<1x16x1xf32> to vector<16x1xf32>
    %90 = vector.shape_cast %87 : vector<16x1xf32> to vector<1x16x1xf32>
    tpu.vector_store %arg7[%c3, %c0_29, %c0_30], %90 {strides = array<i32>} : memref<4x16x1xf32, #tpu.memory_space<vmem>>, vector<1x16x1xf32>,
    return
  }
  func.func @transform_0(%arg0: i32) -> i32 {
    %c0_i32 = arith.constant 0 : i32
    %c0_i32_0 = arith.constant 0 : i32
    return %c0_i32 : i32
  }
  func.func @transform_1(%arg0: i32) -> (i32, i32) {
    %c0_i32 = arith.constant 0 : i32
    %c0_i32_0 = arith.constant 0 : i32
    return %arg0, %c0_i32 : i32, i32
  }
  func.func @transform_2(%arg0: i32) -> (i32, i32) {
    %c0_i32 = arith.constant 0 : i32
    %c0_i32_0 = arith.constant 0 : i32
    return %arg0, %c0_i32 : i32, i32
  }
  func.func @transform_3(%arg0: i32) -> (i32, i32) {
    %c0_i32 = arith.constant 0 : i32
    %c0_i32_0 = arith.constant 0 : i32
    return %arg0, %c0_i32 : i32, i32
  }
  func.func @transform_4(%arg0: i32) -> (i32, i32) {
    %c0_i32 = arith.constant 0 : i32
    %c0_i32_0 = arith.constant 0 : i32
    return %arg0, %c0_i32 : i32, i32
  }
  func.func @transform_5(%arg0: i32) -> (i32, i32) {
    %c0_i32 = arith.constant 0 : i32
    %c0_i32_0 = arith.constant 0 : i32
    %c0_i32_1 = arith.constant 0 : i32
    return %c0_i32, %c0_i32_0 : i32, i32
  }
  func.func @transform_6(%arg0: i32) -> (i32, i32, i32) {
    %c0_i32 = arith.constant 0 : i32
    %c0_i32_0 = arith.constant 0 : i32
    %c0_i32_1 = arith.constant 0 : i32
    return %c0_i32, %arg0, %c0_i32_0 : i32, i32, i32
  }
}

</mosaic_0001>

<llo_original>
// kernel: cross_entropy_wasserstein_loss.6
$region0: #{cross_entropy_wasserstein_loss.6}
  #allocation0 [shape = 'u32[]', space=smem, size = 0x4, offset = 0x4, fixed_abs, tag = 'smem constant byte address 0x4 - core index']
  #allocation1 [shape = 'u32[144,128]{1,0:T(1,128)}', space=vmem, size = 0x12000, scoped, tag = 'internal scratch']
  #allocation2 [shape = 'f32[1]{0:T(128)S(6)}', space=smem, size = 0x200, scoped, tag = 'scoped memory for cross_entropy_wasserstein_loss.6']
  %s0 = inlined_call_operand.<no memory space> [shape: f32[1], index: 0, kind: input, shape index: {}]
  %s1 = inlined_call_operand.vmem [shape: bf16[16,16], index: 1, kind: input, shape index: {}]
  %s2 = inlined_call_operand.vmem [shape: bf16[16,16], index: 2, kind: input, shape index: {}]
  %s3 = inlined_call_operand.vmem [shape: bf16[16,16], index: 3, kind: input, shape index: {}]
  %s4 = inlined_call_operand.vmem [shape: bf16[16,16], index: 4, kind: input, shape index: {}]
  %s5 = inlined_call_operand.vmem [shape: f32[4,16], index: 5, kind: input, shape index: {}]
  %s6 = inlined_call_operand.vmem [shape: f32[4,16,1], index: 6, kind: output, shape index: {}]
  %s7 = sld [smem:[#allocation0]]
  $region34: #{cross_entropy_wasserstein_loss.6} parent=0
    _
  %s9 = ssub.s32 1, %s7
  %s10 = scalar_select 0, %s9, %s7
  %11 = sst [smem:[#allocation2]] %s0
  // Predicated region
  $region2: #{cross_entropy_wasserstein_loss.6} parent=0 // pred_check
    _
  $region3: #{cross_entropy_wasserstein_loss.6} parent=0 // pred_check_branch
    %13 = sbr.rel (0) target = $region5
  $region4: #{cross_entropy_wasserstein_loss.6} parent=0 // pred_region
    _
  $region5: #{cross_entropy_wasserstein_loss.6} parent=0 // pred_fallthru
    _
  // Predicated region
  $region6: #{cross_entropy_wasserstein_loss.6} parent=0 // pred_check
    _
  $region7: #{cross_entropy_wasserstein_loss.6} parent=0 // pred_check_branch
    %15 = sbr.rel (0) target = $region9
  $region8: #{cross_entropy_wasserstein_loss.6} parent=0 // pred_region
    _
  $region9: #{cross_entropy_wasserstein_loss.6} parent=0 // pred_fallthru
    _
  // Predicated region
  $region10: #{cross_entropy_wasserstein_loss.6} parent=0 // pred_check
    _
  $region11: #{cross_entropy_wasserstein_loss.6} parent=0 // pred_check_branch
    %17 = sbr.rel (0) target = $region13
  $region12: #{cross_entropy_wasserstein_loss.6} parent=0 // pred_region
    _
  $region13: #{cross_entropy_wasserstein_loss.6} parent=0 // pred_fallthru
    _
  // Predicated region
  $region14: #{cross_entropy_wasserstein_loss.6} parent=0 // pred_check
    _
  $region15: #{cross_entropy_wasserstein_loss.6} parent=0 // pred_check_branch
    %19 = sbr.rel (0) target = $region17
  $region16: #{cross_entropy_wasserstein_loss.6} parent=0 // pred_region
    _
  $region17: #{cross_entropy_wasserstein_loss.6} parent=0 // pred_fallthru
    _
  // Predicated region
  $region18: #{cross_entropy_wasserstein_loss.6} parent=0 // pred_check
    _
  $region19: #{cross_entropy_wasserstein_loss.6} parent=0 // pred_check_branch
    %21 = sbr.rel (0) target = $region21
  $region20: #{cross_entropy_wasserstein_loss.6} parent=0 // pred_region
    _
  $region21: #{cross_entropy_wasserstein_loss.6} parent=0 // pred_fallthru
    _
  // Predicated region
  $region22: #{cross_entropy_wasserstein_loss.6} parent=0 // pred_check
    _
  $region23: #{cross_entropy_wasserstein_loss.6} parent=0 // pred_check_branch
    %23 = sbr.rel (0) target = $region25
  $region24: #{cross_entropy_wasserstein_loss.6} parent=0 // pred_region
    _
  $region25: #{cross_entropy_wasserstein_loss.6} parent=0 // pred_fallthru
    _
  %s24 = sld [smem:[#allocation2]]
  %v25 = vstv %s24
  %v26 = vrcp.pop %v25
  %s27 = vtos %v26
  %v28 = vld [vmem:[%s5] sm:$0xf]
  %v29 = vld [vmem:[%s1] sm:$0xf]
  %v30 = vld [vmem:[%s1 + $0x4] sm:$0xf]
  %v31 = vunpack.c.l.bf16 %v29
  %v32 = vunpack.c.l.bf16 %v30
  %v33 = vstv %s27
  %v34 = vmul.f32 %v31, %v33
  %v35 = vmul.f32 %v32, %v33
  %v36 = vlaneseq
  %v37 = vshrl.u32 %v36, 7
  %v38 = vsub.s32 0, %v37
  %v39 = vrot.slane %v28, %v38
  %v40 = vsub.f32 %v39, %v34
  %v41 = vsub.f32 %v39, %v35
  %vm42 = vcmask 130048
  %v43 = vsel %vm42, %v40, -inf
  %44 = vmax.xlane.f32.xlu0 %v43
  %v45 = vpop.xlane.xlu0 %44
  %v46 = vsel %vm42, %v41, -inf
  %47 = vmax.xlane.f32.xlu0 %v46
  %v48 = vpop.xlane.xlu0 %47
  %v49 = vsub.f32 %v40, %v45
  %v50 = vsub.f32 %v41, %v48
  %v51 = vmul.f32 %v49, 1.442695
  %v52 = vpow.pop %v51
  %v53 = vmul.f32 %v50, 1.442695
  %v54 = vpow.pop %v53
  %v55 = vsel %vm42, %v52, 0.0
  %56 = vadd.xlane.f32.xlu0 %v55
  %v57 = vpop.xlane.xlu0 %56
  %v58 = vsel %vm42, %v54, 0.0
  %59 = vadd.xlane.f32.xlu0 %v58
  %v60 = vpop.xlane.xlu0 %59
  %s61 = ssub.f32 0.0, %s24
  %v62 = vlog2.pop %v57
  %v63 = vmul.f32 %v62, 0.6931472
  %v64 = vlog2.pop %v60
  %v65 = vmul.f32 %v64, 0.6931472
  %v66 = vadd.f32 %v45, %v63
  %v67 = vadd.f32 %v48, %v65
  %v68 = vstv %s61
  %v69 = vmul.f32 %v68, %v66
  %v70 = vmul.f32 %v68, %v67
  %vm71 = vcmask 7168
  %72 = vst.msk [vmem:[%s6] sm:$0xff] %vm71, %v69
  %73 = vst.msk [vmem:[%s6 + $0x8] sm:$0xff] %vm71, %v70
  %v74 = vld [vmem:[%s2] sm:$0xf]
  %v75 = vld [vmem:[%s2 + $0x4] sm:$0xf]
  %v76 = vunpack.c.l.bf16 %v74
  %v77 = vunpack.c.l.bf16 %v75
  %v78 = vmul.f32 %v76, %v33
  %v79 = vmul.f32 %v77, %v33
  %v80 = vlaneseq
  %v81 = vshrl.u32 %v80, 7
  %v82 = vsub.s32 1, %v81
  %v83 = vrot.slane %v28, %v82
  %v84 = vsub.f32 %v83, %v78
  %v85 = vsub.f32 %v83, %v79
  %v86 = vsel %vm42, %v84, -inf
  %87 = vmax.xlane.f32.xlu0 %v86
  %v88 = vpop.xlane.xlu0 %87
  %v89 = vsel %vm42, %v85, -inf
  %90 = vmax.xlane.f32.xlu0 %v89
  %v91 = vpop.xlane.xlu0 %90
  %v92 = vsub.f32 %v84, %v88
  %v93 = vsub.f32 %v85, %v91
  %v94 = vmul.f32 %v92, 1.442695
  %v95 = vpow.pop %v94
  %v96 = vmul.f32 %v93, 1.442695
  %v97 = vpow.pop %v96
  %v98 = vsel %vm42, %v95, 0.0
  %99 = vadd.xlane.f32.xlu0 %v98
  %v100 = vpop.xlane.xlu0 %99
  %v101 = vsel %vm42, %v97, 0.0
  %102 = vadd.xlane.f32.xlu0 %v101
  %v103 = vpop.xlane.xlu0 %102
  %v104 = vlog2.pop %v100
  %v105 = vmul.f32 %v104, 0.6931472
  %v106 = vlog2.pop %v103
  %v107 = vmul.f32 %v106, 0.6931472
  %v108 = vadd.f32 %v88, %v105
  %v109 = vadd.f32 %v91, %v107
  %v110 = vmul.f32 %v68, %v108
  %v111 = vmul.f32 %v68, %v109
  %s112 = scalar_lea.vmem %s6, 16
  %113 = vst.msk [vmem:[%s112] sm:$0xff] %vm71, %v110
  %114 = vst.msk [vmem:[%s112 + $0x8] sm:$0xff] %vm71, %v111
  %v115 = vld [vmem:[%s3] sm:$0xf]
  %v116 = vld [vmem:[%s3 + $0x4] sm:$0xf]
  %v117 = vunpack.c.l.bf16 %v115
  %v118 = vunpack.c.l.bf16 %v116
  %v119 = vmul.f32 %v117, %v33
  %v120 = vmul.f32 %v118, %v33
  %v121 = vlaneseq
  %v122 = vshrl.u32 %v121, 7
  %v123 = vsub.s32 2, %v122
  %v124 = vrot.slane %v28, %v123
  %v125 = vsub.f32 %v124, %v119
  %v126 = vsub.f32 %v124, %v120
  %v127 = vsel %vm42, %v125, -inf
  %128 = vmax.xlane.f32.xlu0 %v127
  %v129 = vpop.xlane.xlu0 %128
  %v130 = vsel %vm42, %v126, -inf
  %131 = vmax.xlane.f32.xlu0 %v130
  %v132 = vpop.xlane.xlu0 %131
  %v133 = vsub.f32 %v125, %v129
  %v134 = vsub.f32 %v126, %v132
  %v135 = vmul.f32 %v133, 1.442695
  %v136 = vpow.pop %v135
  %v137 = vmul.f32 %v134, 1.442695
  %v138 = vpow.pop %v137
  %v139 = vsel %vm42, %v136, 0.0
  %140 = vadd.xlane.f32.xlu0 %v139
  %v141 = vpop.xlane.xlu0 %140
  %v142 = vsel %vm42, %v138, 0.0
  %143 = vadd.xlane.f32.xlu0 %v142
  %v144 = vpop.xlane.xlu0 %143
  %v145 = vlog2.pop %v141
  %v146 = vmul.f32 %v145, 0.6931472
  %v147 = vlog2.pop %v144
  %v148 = vmul.f32 %v147, 0.6931472
  %v149 = vadd.f32 %v129, %v146
  %v150 = vadd.f32 %v132, %v148
  %v151 = vmul.f32 %v68, %v149
  %v152 = vmul.f32 %v68, %v150
  %s153 = scalar_lea.vmem %s6, 32
  %154 = vst.msk [vmem:[%s153] sm:$0xff] %vm71, %v151
  %155 = vst.msk [vmem:[%s153 + $0x8] sm:$0xff] %vm71, %v152
  %v156 = vld [vmem:[%s4] sm:$0xf]
  %v157 = vld [vmem:[%s4 + $0x4] sm:$0xf]
  %v158 = vunpack.c.l.bf16 %v156
  %v159 = vunpack.c.l.bf16 %v157
  %v160 = vmul.f32 %v158, %v33
  %v161 = vmul.f32 %v159, %v33
  %v162 = vlaneseq
  %v163 = vshrl.u32 %v162, 7
  %v164 = vsub.s32 3, %v163
  %v165 = vrot.slane %v28, %v164
  %v166 = vsub.f32 %v165, %v160
  %v167 = vsub.f32 %v165, %v161
  %v168 = vsel %vm42, %v166, -inf
  %169 = vmax.xlane.f32.xlu0 %v168
  %v170 = vpop.xlane.xlu0 %169
  %v171 = vsel %vm42, %v167, -inf
  %172 = vmax.xlane.f32.xlu0 %v171
  %v173 = vpop.xlane.xlu0 %172
  %v174 = vsub.f32 %v166, %v170
  %v175 = vsub.f32 %v167, %v173
  %v176 = vmul.f32 %v174, 1.442695
  %v177 = vpow.pop %v176
  %v178 = vmul.f32 %v175, 1.442695
  %v179 = vpow.pop %v178
  %v180 = vsel %vm42, %v177, 0.0
  %181 = vadd.xlane.f32.xlu0 %v180
  %v182 = vpop.xlane.xlu0 %181
  %v183 = vsel %vm42, %v179, 0.0
  %184 = vadd.xlane.f32.xlu0 %v183
  %v185 = vpop.xlane.xlu0 %184
  %v186 = vlog2.pop %v182
  %v187 = vmul.f32 %v186, 0.6931472
  %v188 = vlog2.pop %v185
  %v189 = vmul.f32 %v188, 0.6931472
  %v190 = vadd.f32 %v170, %v187
  %v191 = vadd.f32 %v173, %v189
  %v192 = vmul.f32 %v68, %v190
  %v193 = vmul.f32 %v68, %v191
  %s194 = scalar_lea.vmem %s6, 48
  %195 = vst.msk [vmem:[%s194] sm:$0xff] %vm71, %v192
  %196 = vst.msk [vmem:[%s194 + $0x8] sm:$0xff] %vm71, %v193
  // Predicated region
  $region26: #{cross_entropy_wasserstein_loss.6} parent=0 // pred_check
    _
  $region27: #{cross_entropy_wasserstein_loss.6} parent=0 // pred_check_branch
    %198 = sbr.rel (0) target = $region29
  $region28: #{cross_entropy_wasserstein_loss.6} parent=0 // pred_region
    _
  $region29: #{cross_entropy_wasserstein_loss.6} parent=0 // pred_fallthru
    _
  // Predicated region
  $region30: #{cross_entropy_wasserstein_loss.6} parent=0 // pred_check
    _
  $region31: #{cross_entropy_wasserstein_loss.6} parent=0 // pred_check_branch
    %200 = sbr.rel (0) target = $region33
  $region32: #{cross_entropy_wasserstein_loss.6} parent=0 // pred_region
    _
  $region33: #{cross_entropy_wasserstein_loss.6} parent=0 // pred_fallthru
    _

// kernel: cross_entropy_wasserstein_loss.4
$region0: #{cross_entropy_wasserstein_loss.4}
  #allocation0 [shape = 'u32[]', space=smem, size = 0x4, offset = 0x4, fixed_abs, tag = 'smem constant byte address 0x4 - core index']
  #allocation1 [shape = 'u32[144,128]{1,0:T(1,128)}', space=vmem, size = 0x12000, scoped, tag = 'internal scratch']
  %s0 = inlined_call_operand.vmem [shape: bf16[16,512], index: 0, kind: input, shape index: {}]
  %s1 = inlined_call_operand.vmem [shape: bf16[16,512], index: 1, kind: input, shape index: {}]
  %s2 = inlined_call_operand.vmem [shape: s32[16,1], index: 2, kind: input, shape index: {}]
  %s3 = inlined_call_operand.vmem [shape: f32[16,1], index: 3, kind: input, shape index: {}]
  %s4 = inlined_call_operand.vmem [shape: bf16[16,512], index: 4, kind: output, shape index: {0}]
  %s5 = inlined_call_operand.vmem [shape: bf16[16,512], index: 5, kind: output, shape index: {1}]
  %s6 = inlined_call_operand.vmem [shape: f32[16,4], index: 6, kind: output, shape index: {2}]
  %7 = xla_tuple %s4, %s5, %s6
  %s8 = sld [smem:[#allocation0]]
  $region42: #{cross_entropy_wasserstein_loss.4} parent=0
    _
  %s10 = ssub.s32 1, %s8
  %s11 = scalar_select 0, %s10, %s8
  // Predicated region
  $region2: #{cross_entropy_wasserstein_loss.4} parent=0 // pred_check
    _
  $region3: #{cross_entropy_wasserstein_loss.4} parent=0 // pred_check_branch
    %13 = sbr.rel (0) target = $region5
  $region4: #{cross_entropy_wasserstein_loss.4} parent=0 // pred_region
    _
  $region5: #{cross_entropy_wasserstein_loss.4} parent=0 // pred_fallthru
    _
  // Predicated region
  $region6: #{cross_entropy_wasserstein_loss.4} parent=0 // pred_check
    _
  $region7: #{cross_entropy_wasserstein_loss.4} parent=0 // pred_check_branch
    %15 = sbr.rel (0) target = $region9
  $region8: #{cross_entropy_wasserstein_loss.4} parent=0 // pred_region
    _
  $region9: #{cross_entropy_wasserstein_loss.4} parent=0 // pred_fallthru
    _
  // Predicated region
  $region10: #{cross_entropy_wasserstein_loss.4} parent=0 // pred_check
    _
  $region11: #{cross_entropy_wasserstein_loss.4} parent=0 // pred_check_branch
    %17 = sbr.rel (0) target = $region13
  $region12: #{cross_entropy_wasserstein_loss.4} parent=0 // pred_region
    _
  $region13: #{cross_entropy_wasserstein_loss.4} parent=0 // pred_fallthru
    _
  // Predicated region
  $region14: #{cross_entropy_wasserstein_loss.4} parent=0 // pred_check
    _
  $region15: #{cross_entropy_wasserstein_loss.4} parent=0 // pred_check_branch
    %19 = sbr.rel (0) target = $region17
  $region16: #{cross_entropy_wasserstein_loss.4} parent=0 // pred_region
    _
  $region17: #{cross_entropy_wasserstein_loss.4} parent=0 // pred_fallthru
    _
  %v20 = vld [vmem:[%s0] sm:$0xff]
  %v21 = vld [vmem:[%s0 + $0x8] sm:$0xff]
  %v22 = vld [vmem:[%s0 + $0x10] sm:$0xff]
  %v23 = vld [vmem:[%s0 + $0x18] sm:$0xff]
  %v24 = vunpack.c.l.bf16 %v20
  %v25 = vunpack.c.h.bf16 %v20
  %v26 = vunpack.c.l.bf16 %v21
  %v27 = vunpack.c.h.bf16 %v21
  %v28 = vunpack.c.l.bf16 %v22
  %v29 = vunpack.c.h.bf16 %v22
  %v30 = vunpack.c.l.bf16 %v23
  %v31 = vunpack.c.h.bf16 %v23
  %v32 = vmax.f32 %v24, %v26
  %v33 = vmax.f32 %v25, %v27
  %v34 = vmax.f32 %v32, %v33
  %35 = vmax.xlane.f32.xlu0 %v34
  %v36 = vpop.xlane.xlu0 %35
  %v37 = vmax.f32 %v28, %v30
  %v38 = vmax.f32 %v29, %v31
  %v39 = vmax.f32 %v37, %v38
  %40 = vmax.xlane.f32.xlu0 %v39
  %v41 = vpop.xlane.xlu0 %40
  %v42 = vsub.f32 %v24, %v36
  %v43 = vsub.f32 %v25, %v36
  %v44 = vsub.f32 %v26, %v36
  %v45 = vsub.f32 %v27, %v36
  %v46 = vsub.f32 %v28, %v41
  %v47 = vsub.f32 %v29, %v41
  %v48 = vsub.f32 %v30, %v41
  %v49 = vsub.f32 %v31, %v41
  %v50 = vmul.f32 %v42, 1.442695
  %v51 = vpow.pop %v50
  %v52 = vmul.f32 %v43, 1.442695
  %v53 = vpow.pop %v52
  %v54 = vmul.f32 %v44, 1.442695
  %v55 = vpow.pop %v54
  %v56 = vmul.f32 %v45, 1.442695
  %v57 = vpow.pop %v56
  %v58 = vmul.f32 %v46, 1.442695
  %v59 = vpow.pop %v58
  %v60 = vmul.f32 %v47, 1.442695
  %v61 = vpow.pop %v60
  %v62 = vmul.f32 %v48, 1.442695
  %v63 = vpow.pop %v62
  %v64 = vmul.f32 %v49, 1.442695
  %v65 = vpow.pop %v64
  %v66 = vadd.f32 %v51, %v53
  %v67 = vadd.f32 %v66, %v55
  %v68 = vadd.f32 %v67, %v57
  %69 = vadd.xlane.f32.xlu0 %v68
  %v70 = vpop.xlane.xlu0 %69
  %v71 = vadd.f32 %v59, %v61
  %v72 = vadd.f32 %v71, %v63
  %v73 = vadd.f32 %v72, %v65
  %74 = vadd.xlane.f32.xlu0 %v73
  %v75 = vpop.xlane.xlu0 %74
  %v76 = vrcp.pop %v70
  %v77 = vrcp.pop %v75
  %v78 = vmul.f32 %v51, %v76
  %v79 = vmul.f32 %v53, %v76
  %v80 = vmul.f32 %v55, %v76
  %v81 = vmul.f32 %v57, %v76
  %v82 = vmul.f32 %v59, %v77
  %v83 = vmul.f32 %v61, %v77
  %v84 = vmul.f32 %v63, %v77
  %v85 = vmul.f32 %v65, %v77
  %v86 = vpack.c.bf16 %v82, %v78
  %v87 = vpack.c.bf16 %v83, %v79
  %v88 = vpack.c.bf16 %v84, %v80
  %v89 = vpack.c.bf16 %v85, %v81
  %v94 = vunpack.c.l.b16 %v86
  %v95 = vunpack.c.l.b16 %v87
  %v96 = vunpack.c.l.b16 %v88
  %v97 = vunpack.c.l.b16 %v89
  %v98 = vunpack.c.h.b16 %v86
  %v99 = vunpack.c.h.b16 %v87
  %v100 = vunpack.c.h.b16 %v88
  %v101 = vunpack.c.h.b16 %v89
  %v102 = vpack.c.b16 %v95, %v94
  %v103 = vpack.c.b16 %v97, %v96
  %v104 = vpack.c.b16 %v99, %v98
  %v105 = vpack.c.b16 %v101, %v100
  %110 = vst [vmem:[%s4] sm:$0xff] %v102
  %111 = vst [vmem:[%s4 + $0x8] sm:$0xff] %v103
  %112 = vst [vmem:[%s4 + $0x10] sm:$0xff] %v104
  %113 = vst [vmem:[%s4 + $0x18] sm:$0xff] %v105
  %v114 = vunpack.c.l.bf16 %v86
  %v115 = vunpack.c.l.bf16 %v87
  %v116 = vunpack.c.l.bf16 %v88
  %v117 = vunpack.c.l.bf16 %v89
  %v118 = vunpack.c.h.bf16 %v86
  %v119 = vunpack.c.h.bf16 %v87
  %v120 = vunpack.c.h.bf16 %v88
  %v121 = vunpack.c.h.bf16 %v89
  %v122 = vmul.f32 %v114, %v114
  %v123 = vmul.f32 %v115, %v115
  %v124 = vmul.f32 %v116, %v116
  %v125 = vmul.f32 %v117, %v117
  %v126 = vmul.f32 %v118, %v118
  %v127 = vmul.f32 %v119, %v119
  %v128 = vmul.f32 %v120, %v120
  %v129 = vmul.f32 %v121, %v121
  %v130 = vadd.f32 %v122, %v123
  %v131 = vadd.f32 %v130, %v124
  %v132 = vadd.f32 %v131, %v125
  %133 = vadd.xlane.f32.xlu0 %v132
  %v134 = vpop.xlane.xlu0 %133
  %v135 = vadd.f32 %v126, %v127
  %v136 = vadd.f32 %v135, %v128
  %v137 = vadd.f32 %v136, %v129
  %138 = vadd.xlane.f32.xlu0 %v137
  %v139 = vpop.xlane.xlu0 %138
  %v140 = vlog2.pop %v70
  %v141 = vmul.f32 %v140, 0.6931472
  %v142 = vlog2.pop %v75
  %v143 = vmul.f32 %v142, 0.6931472
  %v144 = vadd.f32 %v36, %v141
  %v145 = vadd.f32 %v41, %v143
  %v146 = vld [vmem:[%s2] sm:$0xff]
  %v147 = vld [vmem:[%s2 + $0x8] sm:$0xff]
  %vm148 = vcmp.ne.s32.totalorder %v146, 4294967196
  %vm149 = vcmp.ne.s32.totalorder %v147, 4294967196
  %v150 = vsel %vm148, 1, 0
  %v151 = vsel %vm149, 1, 0
  %v152 = vcvt.s32.f32 %v150
  %v153 = vcvt.s32.f32 %v151
  %v154 = vld [vmem:[%s3] sm:$0xff]
  %v155 = vld [vmem:[%s3 + $0x8] sm:$0xff]
  %v156 = vsub.f32 %v144, %v154
  %v157 = vsub.f32 %v145, %v155
  %v158 = vmul.f32 %v156, %v152
  %v159 = vmul.f32 %v157, %v153
  %v160 = vld [vmem:[%s1] sm:$0xff]
  %v161 = vld [vmem:[%s1 + $0x8] sm:$0xff]
  %v162 = vld [vmem:[%s1 + $0x10] sm:$0xff]
  %v163 = vld [vmem:[%s1 + $0x18] sm:$0xff]
  %v164 = vunpack.c.l.bf16 %v160
  %v165 = vunpack.c.h.bf16 %v160
  %v166 = vunpack.c.l.bf16 %v161
  %v167 = vunpack.c.h.bf16 %v161
  %v168 = vunpack.c.l.bf16 %v162
  %v169 = vunpack.c.h.bf16 %v162
  %v170 = vunpack.c.l.bf16 %v163
  %v171 = vunpack.c.h.bf16 %v163
  %v172 = vmax.f32 %v164, %v166
  %v173 = vmax.f32 %v165, %v167
  %v174 = vmax.f32 %v172, %v173
  %175 = vmax.xlane.f32.xlu0 %v174
  %v176 = vpop.xlane.xlu0 %175
  %v177 = vmax.f32 %v168, %v170
  %v178 = vmax.f32 %v169, %v171
  %v179 = vmax.f32 %v177, %v178
  %180 = vmax.xlane.f32.xlu0 %v179
  %v181 = vpop.xlane.xlu0 %180
  %v182 = vsub.f32 %v164, %v176
  %v183 = vsub.f32 %v165, %v176
  %v184 = vsub.f32 %v166, %v176
  %v185 = vsub.f32 %v167, %v176
  %v186 = vsub.f32 %v168, %v181
  %v187 = vsub.f32 %v169, %v181
  %v188 = vsub.f32 %v170, %v181
  %v189 = vsub.f32 %v171, %v181
  %v190 = vmul.f32 %v182, 1.442695
  %v191 = vpow.pop %v190
  %v192 = vmul.f32 %v183, 1.442695
  %v193 = vpow.pop %v192
  %v194 = vmul.f32 %v184, 1.442695
  %v195 = vpow.pop %v194
  %v196 = vmul.f32 %v185, 1.442695
  %v197 = vpow.pop %v196
  %v198 = vmul.f32 %v186, 1.442695
  %v199 = vpow.pop %v198
  %v200 = vmul.f32 %v187, 1.442695
  %v201 = vpow.pop %v200
  %v202 = vmul.f32 %v188, 1.442695
  %v203 = vpow.pop %v202
  %v204 = vmul.f32 %v189, 1.442695
  %v205 = vpow.pop %v204
  %v206 = vadd.f32 %v191, %v193
  %v207 = vadd.f32 %v206, %v195
  %v208 = vadd.f32 %v207, %v197
  %209 = vadd.xlane.f32.xlu0 %v208
  %v210 = vpop.xlane.xlu0 %209
  %v211 = vadd.f32 %v199, %v201
  %v212 = vadd.f32 %v211, %v203
  %v213 = vadd.f32 %v212, %v205
  %214 = vadd.xlane.f32.xlu0 %v213
  %v215 = vpop.xlane.xlu0 %214
  %v216 = vrcp.pop %v210
  %v217 = vrcp.pop %v215
  %v218 = vmul.f32 %v191, %v216
  %v219 = vmul.f32 %v193, %v216
  %v220 = vmul.f32 %v195, %v216
  %v221 = vmul.f32 %v197, %v216
  %v222 = vmul.f32 %v199, %v217
  %v223 = vmul.f32 %v201, %v217
  %v224 = vmul.f32 %v203, %v217
  %v225 = vmul.f32 %v205, %v217
  %v226 = vpack.c.bf16 %v222, %v218
  %v227 = vpack.c.bf16 %v223, %v219
  %v228 = vpack.c.bf16 %v224, %v220
  %v229 = vpack.c.bf16 %v225, %v221
  %v234 = vunpack.c.l.b16 %v226
  %v235 = vunpack.c.l.b16 %v227
  %v236 = vunpack.c.l.b16 %v228
  %v237 = vunpack.c.l.b16 %v229
  %v238 = vunpack.c.h.b16 %v226
  %v239 = vunpack.c.h.b16 %v227
  %v240 = vunpack.c.h.b16 %v228
  %v241 = vunpack.c.h.b16 %v229
  %v242 = vpack.c.b16 %v235, %v234
  %v243 = vpack.c.b16 %v237, %v236
  %v244 = vpack.c.b16 %v239, %v238
  %v245 = vpack.c.b16 %v241, %v240
  %250 = vst [vmem:[%s5] sm:$0xff] %v242
  %251 = vst [vmem:[%s5 + $0x8] sm:$0xff] %v243
  %252 = vst [vmem:[%s5 + $0x10] sm:$0xff] %v244
  %253 = vst [vmem:[%s5 + $0x18] sm:$0xff] %v245
  %v254 = vunpack.c.l.bf16 %v226
  %v255 = vunpack.c.l.bf16 %v227
  %v256 = vunpack.c.l.bf16 %v228
  %v257 = vunpack.c.l.bf16 %v229
  %v258 = vunpack.c.h.bf16 %v226
  %v259 = vunpack.c.h.bf16 %v227
  %v260 = vunpack.c.h.bf16 %v228
  %v261 = vunpack.c.h.bf16 %v229
  %v262 = vmul.f32 %v254, %v254
  %v263 = vmul.f32 %v255, %v255
  %v264 = vmul.f32 %v256, %v256
  %v265 = vmul.f32 %v257, %v257
  %v266 = vmul.f32 %v258, %v258
  %v267 = vmul.f32 %v259, %v259
  %v268 = vmul.f32 %v260, %v260
  %v269 = vmul.f32 %v261, %v261
  %v270 = vadd.f32 %v262, %v263
  %v271 = vadd.f32 %v270, %v264
  %v272 = vadd.f32 %v271, %v265
  %273 = vadd.xlane.f32.xlu0 %v272
  %v274 = vpop.xlane.xlu0 %273
  %v275 = vadd.f32 %v266, %v267
  %v276 = vadd.f32 %v275, %v268
  %v277 = vadd.f32 %v276, %v269
  %278 = vadd.xlane.f32.xlu0 %v277
  %v279 = vpop.xlane.xlu0 %278
  %vm280 = vcmask 7168
  %281 = vst.msk [vmem:[%s6] sm:$0xff] %vm280, %v158
  %282 = vst.msk [vmem:[%s6 + $0x8] sm:$0xff] %vm280, %v159
  %285 = vrot.lane.b32.xlu0 %v152, 1
  %v286 = vpop.permute.xlu0 %285
  %287 = vrot.lane.b32.xlu0 %v153, 1
  %v288 = vpop.permute.xlu0 %287
  %vm291 = vcmask 15368
  %292 = vst.msk [vmem:[%s6] sm:$0xff] %vm291, %v286
  %293 = vst.msk [vmem:[%s6 + $0x8] sm:$0xff] %vm291, %v288
  %vm294 = vcmask 23568
  %295 = vst.msk [vmem:[%s6] sm:$0xff] %vm294, %v134
  %296 = vst.msk [vmem:[%s6 + $0x8] sm:$0xff] %vm294, %v139
  %vm297 = vcmask 31768
  %298 = vst.msk [vmem:[%s6] sm:$0xff] %vm297, %v274
  %299 = vst.msk [vmem:[%s6 + $0x8] sm:$0xff] %vm297, %v279
  // Predicated region
  $region18: #{cross_entropy_wasserstein_loss.4} parent=0 // pred_check
    _
  $region19: #{cross_entropy_wasserstein_loss.4} parent=0 // pred_check_branch
    %301 = sbr.rel (0) target = $region21
  $region20: #{cross_entropy_wasserstein_loss.4} parent=0 // pred_region
    _
  $region21: #{cross_entropy_wasserstein_loss.4} parent=0 // pred_fallthru
    _
  // Predicated region
  $region22: #{cross_entropy_wasserstein_loss.4} parent=0 // pred_check
    _
  $region23: #{cross_entropy_wasserstein_loss.4} parent=0 // pred_check_branch
    %303 = sbr.rel (0) target = $region25
  $region24: #{cross_entropy_wasserstein_loss.4} parent=0 // pred_region
    _
  $region25: #{cross_entropy_wasserstein_loss.4} parent=0 // pred_fallthru
    _
  // Predicated region
  $region26: #{cross_entropy_wasserstein_loss.4} parent=0 // pred_check
    _
  $region27: #{cross_entropy_wasserstein_loss.4} parent=0 // pred_check_branch
    %305 = sbr.rel (0) target = $region29
  $region28: #{cross_entropy_wasserstein_loss.4} parent=0 // pred_region
    _
  $region29: #{cross_entropy_wasserstein_loss.4} parent=0 // pred_fallthru
    _
  // Predicated region
  $region30: #{cross_entropy_wasserstein_loss.4} parent=0 // pred_check
    _
  $region31: #{cross_entropy_wasserstein_loss.4} parent=0 // pred_check_branch
    %307 = sbr.rel (0) target = $region33
  $region32: #{cross_entropy_wasserstein_loss.4} parent=0 // pred_region
    _
  $region33: #{cross_entropy_wasserstein_loss.4} parent=0 // pred_fallthru
    _
  // Predicated region
  $region34: #{cross_entropy_wasserstein_loss.4} parent=0 // pred_check
    _
  $region35: #{cross_entropy_wasserstein_loss.4} parent=0 // pred_check_branch
    %309 = sbr.rel (0) target = $region37
  $region36: #{cross_entropy_wasserstein_loss.4} parent=0 // pred_region
    _
  $region37: #{cross_entropy_wasserstein_loss.4} parent=0 // pred_fallthru
    _
  // Predicated region
  $region38: #{cross_entropy_wasserstein_loss.4} parent=0 // pred_check
    _
  $region39: #{cross_entropy_wasserstein_loss.4} parent=0 // pred_check_branch
    %311 = sbr.rel (0) target = $region41
  $region40: #{cross_entropy_wasserstein_loss.4} parent=0 // pred_region
    _
  $region41: #{cross_entropy_wasserstein_loss.4} parent=0 // pred_fallthru
    _

// kernel: cross_entropy_wasserstein_loss.5
$region0: #{cross_entropy_wasserstein_loss.5}
  #allocation0 [shape = 'u32[]', space=smem, size = 0x4, offset = 0x4, fixed_abs, tag = 'smem constant byte address 0x4 - core index']
  #allocation1 [shape = 'u32[144,128]{1,0:T(1,128)}', space=vmem, size = 0x12000, scoped, tag = 'internal scratch']
  #allocation2 [shape = 'f32[16,16]{1,0:T(8,128)}', space=vmem, size = 0x2000, scoped, tag = 'scratch operand']
  #allocation3 [shape = 'f32[16,16]{1,0:T(8,128)}', space=vmem, size = 0x2000, scoped, tag = 'scratch operand']
  #allocation4 [shape = 'f32[16,16]{1,0:T(8,128)}', space=vmem, size = 0x2000, scoped, tag = 'scratch operand']
  %s0 = inlined_call_operand.vmem [shape: bf16[16,512], index: 0, kind: input, shape index: {}, may-alias: {0,2}]
  %s1 = inlined_call_operand.vmem [shape: bf16[16,512], index: 1, kind: input, shape index: {}, may-alias: {1,3}]
  %s2 = inlined_call_operand.vmem [shape: bf16[16,512], index: 2, kind: input, shape index: {}, may-alias: {0,2}]
  %s3 = inlined_call_operand.vmem [shape: bf16[16,512], index: 3, kind: input, shape index: {}, may-alias: {1,3}]
  %s4 = inlined_call_operand.vmem [shape: f32[16,1], index: 4, kind: input, shape index: {}]
  %s5 = inlined_call_operand.vmem [shape: f32[16,1], index: 5, kind: input, shape index: {}]
  %s6 = inlined_call_operand.vmem [shape: f32[1,16], index: 6, kind: input, shape index: {}]
  %s7 = inlined_call_operand.vmem [shape: f32[1,16], index: 7, kind: input, shape index: {}]
  %s8 = inlined_call_operand.vmem [shape: bf16[16,16], index: 8, kind: output, shape index: {0}]
  %s9 = inlined_call_operand.vmem [shape: bf16[16,16], index: 9, kind: output, shape index: {1}]
  %s10 = inlined_call_operand.vmem [shape: bf16[16,16], index: 10, kind: output, shape index: {2}]
  %11 = xla_tuple %s8, %s9, %s10
  %s12 = sld [smem:[#allocation0]]
  $region70: #{cross_entropy_wasserstein_loss.5} parent=0
    _
  %s14 = ssub.s32 1, %s12
  %s15 = scalar_select 0, %s14, %s12
  // Predicated region
  $region2: #{cross_entropy_wasserstein_loss.5} parent=0 // pred_check
    _
  $region3: #{cross_entropy_wasserstein_loss.5} parent=0 // pred_check_branch
    %17 = sbr.rel (0) target = $region5
  $region4: #{cross_entropy_wasserstein_loss.5} parent=0 // pred_region
    _
  $region5: #{cross_entropy_wasserstein_loss.5} parent=0 // pred_fallthru
    _
  // Predicated region
  $region6: #{cross_entropy_wasserstein_loss.5} parent=0 // pred_check
    _
  $region7: #{cross_entropy_wasserstein_loss.5} parent=0 // pred_check_branch
    %19 = sbr.rel (0) target = $region9
  $region8: #{cross_entropy_wasserstein_loss.5} parent=0 // pred_region
    _
  $region9: #{cross_entropy_wasserstein_loss.5} parent=0 // pred_fallthru
    _
  // Predicated region
  $region10: #{cross_entropy_wasserstein_loss.5} parent=0 // pred_check
    _
  $region11: #{cross_entropy_wasserstein_loss.5} parent=0 // pred_check_branch
    %21 = sbr.rel (0) target = $region13
  $region12: #{cross_entropy_wasserstein_loss.5} parent=0 // pred_region
    _
  $region13: #{cross_entropy_wasserstein_loss.5} parent=0 // pred_fallthru
    _
  // Predicated region
  $region14: #{cross_entropy_wasserstein_loss.5} parent=0 // pred_check
    _
  $region15: #{cross_entropy_wasserstein_loss.5} parent=0 // pred_check_branch
    %23 = sbr.rel (0) target = $region17
  $region16: #{cross_entropy_wasserstein_loss.5} parent=0 // pred_region
    _
  $region17: #{cross_entropy_wasserstein_loss.5} parent=0 // pred_fallthru
    _
  // Predicated region
  $region18: #{cross_entropy_wasserstein_loss.5} parent=0 // pred_check
    _
  $region19: #{cross_entropy_wasserstein_loss.5} parent=0 // pred_check_branch
    %25 = sbr.rel (0) target = $region21
  $region20: #{cross_entropy_wasserstein_loss.5} parent=0 // pred_region
    _
  $region21: #{cross_entropy_wasserstein_loss.5} parent=0 // pred_fallthru
    _
  // Predicated region
  $region22: #{cross_entropy_wasserstein_loss.5} parent=0 // pred_check
    _
  $region23: #{cross_entropy_wasserstein_loss.5} parent=0 // pred_check_branch
    %27 = sbr.rel (0) target = $region25
  $region24: #{cross_entropy_wasserstein_loss.5} parent=0 // pred_region
    _
  $region25: #{cross_entropy_wasserstein_loss.5} parent=0 // pred_fallthru
    _
  // Predicated region
  $region26: #{cross_entropy_wasserstein_loss.5} parent=0 // pred_check
    _
  $region27: #{cross_entropy_wasserstein_loss.5} parent=0 // pred_check_branch
    %29 = sbr.rel (0) target = $region29
  $region28: #{cross_entropy_wasserstein_loss.5} parent=0 // pred_region
    _
  $region29: #{cross_entropy_wasserstein_loss.5} parent=0 // pred_fallthru
    _
  // Predicated region
  $region30: #{cross_entropy_wasserstein_loss.5} parent=0 // pred_check
    _
  $region31: #{cross_entropy_wasserstein_loss.5} parent=0 // pred_check_branch
    %31 = sbr.rel (0) target = $region33
  $region32: #{cross_entropy_wasserstein_loss.5} parent=0 // pred_region
    _
  $region33: #{cross_entropy_wasserstein_loss.5} parent=0 // pred_fallthru
    _
  %p33 = scmp.eq.s32.totalorder 0, 0
  // Predicated region
  $region34: #{cross_entropy_wasserstein_loss.5} parent=0 // pred_check
    %p34 = pneg %p33
  $region35: #{cross_entropy_wasserstein_loss.5} parent=0 // pred_check_branch
    %36 = sbr.rel (%p34) target = $region37
  $region36: #{cross_entropy_wasserstein_loss.5} parent=0 // pred_region
    %vm37 = vcmask 130048
    %38 = vst.msk [vmem:[#allocation2] sm:$0xff] %vm37, 0.0
    %39 = vst.msk [vmem:[#allocation2 + $0x8] sm:$0xff] %vm37, 0.0
    %40 = vst.msk [vmem:[#allocation3] sm:$0xff] %vm37, 0.0
    %41 = vst.msk [vmem:[#allocation3 + $0x8] sm:$0xff] %vm37, 0.0
    %42 = vst.msk [vmem:[#allocation4] sm:$0xff] %vm37, 0.0
    %43 = vst.msk [vmem:[#allocation4 + $0x8] sm:$0xff] %vm37, 0.0
  $region37: #{cross_entropy_wasserstein_loss.5} parent=0 // pred_fallthru
    _
  %v44 = vld [vmem:[%s0] sm:$0xff]
  %v45 = vld [vmem:[%s0 + $0x8] sm:$0xff]
  %v46 = vld [vmem:[%s0 + $0x10] sm:$0xff]
  %v47 = vld [vmem:[%s0 + $0x18] sm:$0xff]
  %v48 = vld [vmem:[%s3] sm:$0xff]
  %v49 = vld [vmem:[%s3 + $0x8] sm:$0xff]
  %v50 = vld [vmem:[%s3 + $0x10] sm:$0xff]
  %v51 = vld [vmem:[%s3 + $0x18] sm:$0xff]
  %v52 = vld [vmem:[#allocation2] sm:$0xff]
  %v53 = vld [vmem:[#allocation2 + $0x8] sm:$0xff]
  %v58 = vunpack.c.l.b16 %v44
  %v59 = vunpack.c.h.b16 %v44
  %v60 = vunpack.c.l.b16 %v45
  %v61 = vunpack.c.h.b16 %v45
  %v62 = vunpack.c.l.b16 %v46
  %v63 = vunpack.c.h.b16 %v46
  %v64 = vunpack.c.l.b16 %v47
  %v65 = vunpack.c.h.b16 %v47
  %v66 = vpack.c.b16 %v62, %v58
  %v67 = vpack.c.b16 %v63, %v59
  %v68 = vpack.c.b16 %v64, %v60
  %v69 = vpack.c.b16 %v65, %v61
  %v78 = vunpack.c.l.b16 %v48
  %v79 = vunpack.c.h.b16 %v48
  %v80 = vunpack.c.l.b16 %v49
  %v81 = vunpack.c.h.b16 %v49
  %v82 = vunpack.c.l.b16 %v50
  %v83 = vunpack.c.h.b16 %v50
  %v84 = vunpack.c.l.b16 %v51
  %v85 = vunpack.c.h.b16 %v51
  %v86 = vpack.c.b16 %v82, %v78
  %v87 = vpack.c.b16 %v83, %v79
  %v88 = vpack.c.b16 %v84, %v80
  %v89 = vpack.c.b16 %v85, %v81
  %94 = vmatprep.subr.bf16.mxu0 0
  %95 = vmatpush1.bf16.xpose.msra.mxu0 0
  %96 = vmatprep.subr.bf16.mxu0 0
  %97 = vmatpush1.bf16.xpose.msra.mxu0 0
  %98 = vmatprep.subr.bf16.mxu0 0
  %99 = vmatpush1.bf16.xpose.msra.mxu0 0
  %100 = vmatprep.subr.bf16.mxu0 0
  %101 = vmatpush1.bf16.xpose.msra.mxu0 0
  %102 = vmatprep.subr.bf16.mxu0 0
  %103 = vmatpush1.bf16.xpose.msra.mxu0 0
  %104 = vmatprep.subr.bf16.mxu0 0
  %105 = vmatpush1.bf16.xpose.msra.mxu0 0
  %106 = vmatprep.subr.bf16.mxu0 0
  %107 = vmatpush1.bf16.xpose.msra.mxu0 0
  %108 = vmatprep.subr.bf16.mxu0 %v87
  %109 = vmatpush1.bf16.xpose.msra.mxu0 %v86
  %110 = vmatprep.subr.bf16.mxu0 0
  %111 = vmatpush2.bf16.xpose.msra.mxu0 0
  %112 = vmatprep.subr.bf16.mxu0 0
  %113 = vmatpush2.bf16.xpose.msra.mxu0 0
  %114 = vmatprep.subr.bf16.mxu0 0
  %115 = vmatpush2.bf16.xpose.msra.mxu0 0
  %116 = vmatprep.subr.bf16.mxu0 0
  %117 = vmatpush2.bf16.xpose.msra.mxu0 0
  %118 = vmatprep.subr.bf16.mxu0 0
  %119 = vmatpush2.bf16.xpose.msra.mxu0 0
  %120 = vmatprep.subr.bf16.mxu0 0
  %121 = vmatpush2.bf16.xpose.msra.mxu0 0
  %122 = vmatprep.subr.bf16.mxu0 0
  %123 = vmatpush2.bf16.xpose.msra.mxu0 0
  %124 = vmatprep.subr.bf16.mxu0 0
  %125 = vmatpush2.bf16.xpose.msra.mxu0 0
  %126 = vmatprep.mubr.bf16.mxu0 %v67
  %127 = vmatmul.mubr.bf16.gmra.mxu0 %v66
  %v128 = vpop.f32.mrf.mxu0
  %v129 = vadd.f32 0.0, %v128
  %v130 = vpop.f32.mrf.mxu0
  %v131 = vpop.f32.mrf.mxu0
  %v132 = vadd.f32 0.0, %v131
  %v133 = vpop.f32.mrf.mxu0
  %134 = vdwg.mxu0
  %135 = vmatprep.subr.bf16.mxu0 0
  %136 = vmatpush1.bf16.xpose.msra.mxu0 0
  %137 = vmatprep.subr.bf16.mxu0 0
  %138 = vmatpush1.bf16.xpose.msra.mxu0 0
  %139 = vmatprep.subr.bf16.mxu0 0
  %140 = vmatpush1.bf16.xpose.msra.mxu0 0
  %141 = vmatprep.subr.bf16.mxu0 0
  %142 = vmatpush1.bf16.xpose.msra.mxu0 0
  %143 = vmatprep.subr.bf16.mxu0 0
  %144 = vmatpush1.bf16.xpose.msra.mxu0 0
  %145 = vmatprep.subr.bf16.mxu0 0
  %146 = vmatpush1.bf16.xpose.msra.mxu0 0
  %147 = vmatprep.subr.bf16.mxu0 0
  %148 = vmatpush1.bf16.xpose.msra.mxu0 0
  %149 = vmatprep.subr.bf16.mxu0 %v89
  %150 = vmatpush1.bf16.xpose.msra.mxu0 %v88
  %151 = vmatprep.subr.bf16.mxu0 0
  %152 = vmatpush2.bf16.xpose.msra.mxu0 0
  %153 = vmatprep.subr.bf16.mxu0 0
  %154 = vmatpush2.bf16.xpose.msra.mxu0 0
  %155 = vmatprep.subr.bf16.mxu0 0
  %156 = vmatpush2.bf16.xpose.msra.mxu0 0
  %157 = vmatprep.subr.bf16.mxu0 0
  %158 = vmatpush2.bf16.xpose.msra.mxu0 0
  %159 = vmatprep.subr.bf16.mxu0 0
  %160 = vmatpush2.bf16.xpose.msra.mxu0 0
  %161 = vmatprep.subr.bf16.mxu0 0
  %162 = vmatpush2.bf16.xpose.msra.mxu0 0
  %163 = vmatprep.subr.bf16.mxu0 0
  %164 = vmatpush2.bf16.xpose.msra.mxu0 0
  %165 = vmatprep.subr.bf16.mxu0 0
  %166 = vmatpush2.bf16.xpose.msra.mxu0 0
  %167 = vmatprep.mubr.bf16.mxu0 %v69
  %168 = vmatmul.mubr.bf16.gmra.mxu0 %v68
  %v169 = vpop.f32.mrf.mxu0
  %v170 = vadd.f32 %v129, %v169
  %v171 = vpop.f32.mrf.mxu0
  %v172 = vpop.f32.mrf.mxu0
  %v173 = vadd.f32 %v132, %v172
  %v174 = vpop.f32.mrf.mxu0
  %175 = vdwg.mxu0
  %v176 = vadd.f32 %v52, %v170
  %v177 = vadd.f32 %v53, %v173
  %vm178 = vcmask 130048
  %179 = vst.msk [vmem:[#allocation2] sm:$0xff] %vm178, %v176
  %180 = vst.msk [vmem:[#allocation2 + $0x8] sm:$0xff] %vm178, %v177
  %p181 = scmp.le.s32.totalorder 0, 0
  // Predicated region
  $region38: #{cross_entropy_wasserstein_loss.5} parent=0 // pred_check
    %p182 = pneg %p181
  $region39: #{cross_entropy_wasserstein_loss.5} parent=0 // pred_check_branch
    %184 = sbr.rel (%p182) target = $region41
  $region40: #{cross_entropy_wasserstein_loss.5} parent=0 // pred_region
    %v185 = vld [vmem:[#allocation3] sm:$0xff]
    %v186 = vld [vmem:[#allocation3 + $0x8] sm:$0xff]
    %v187 = vld [vmem:[%s2] sm:$0xff]
    %v188 = vld [vmem:[%s2 + $0x8] sm:$0xff]
    %v189 = vld [vmem:[%s2 + $0x10] sm:$0xff]
    %v190 = vld [vmem:[%s2 + $0x18] sm:$0xff]
    %v195 = vunpack.c.l.b16 %v187
    %v196 = vunpack.c.h.b16 %v187
    %v197 = vunpack.c.l.b16 %v188
    %v198 = vunpack.c.h.b16 %v188
    %v199 = vunpack.c.l.b16 %v189
    %v200 = vunpack.c.h.b16 %v189
    %v201 = vunpack.c.l.b16 %v190
    %v202 = vunpack.c.h.b16 %v190
    %v203 = vpack.c.b16 %v199, %v195
    %v204 = vpack.c.b16 %v200, %v196
    %v205 = vpack.c.b16 %v201, %v197
    %v206 = vpack.c.b16 %v202, %v198
    %211 = vmatprep.subr.bf16.mxu0 0
    %212 = vmatpush1.bf16.xpose.msra.mxu0 0
    %213 = vmatprep.subr.bf16.mxu0 0
    %214 = vmatpush1.bf16.xpose.msra.mxu0 0
    %215 = vmatprep.subr.bf16.mxu0 0
    %216 = vmatpush1.bf16.xpose.msra.mxu0 0
    %217 = vmatprep.subr.bf16.mxu0 0
    %218 = vmatpush1.bf16.xpose.msra.mxu0 0
    %219 = vmatprep.subr.bf16.mxu0 0
    %220 = vmatpush1.bf16.xpose.msra.mxu0 0
    %221 = vmatprep.subr.bf16.mxu0 0
    %222 = vmatpush1.bf16.xpose.msra.mxu0 0
    %223 = vmatprep.subr.bf16.mxu0 0
    %224 = vmatpush1.bf16.xpose.msra.mxu0 0
    %225 = vmatprep.subr.bf16.mxu0 %v204
    %226 = vmatpush1.bf16.xpose.msra.mxu0 %v203
    %227 = vmatprep.subr.bf16.mxu0 0
    %228 = vmatpush2.bf16.xpose.msra.mxu0 0
    %229 = vmatprep.subr.bf16.mxu0 0
    %230 = vmatpush2.bf16.xpose.msra.mxu0 0
    %231 = vmatprep.subr.bf16.mxu0 0
    %232 = vmatpush2.bf16.xpose.msra.mxu0 0
    %233 = vmatprep.subr.bf16.mxu0 0
    %234 = vmatpush2.bf16.xpose.msra.mxu0 0
    %235 = vmatprep.subr.bf16.mxu0 0
    %236 = vmatpush2.bf16.xpose.msra.mxu0 0
    %237 = vmatprep.subr.bf16.mxu0 0
    %238 = vmatpush2.bf16.xpose.msra.mxu0 0
    %239 = vmatprep.subr.bf16.mxu0 0
    %240 = vmatpush2.bf16.xpose.msra.mxu0 0
    %241 = vmatprep.subr.bf16.mxu0 0
    %242 = vmatpush2.bf16.xpose.msra.mxu0 0
    %243 = vmatprep.mubr.bf16.mxu0 %v67
    %244 = vmatmul.mubr.bf16.gmra.mxu0 %v66
    %v245 = vpop.f32.mrf.mxu0
    %v246 = vadd.f32 0.0, %v245
    %v247 = vpop.f32.mrf.mxu0
    %v248 = vpop.f32.mrf.mxu0
    %v249 = vadd.f32 0.0, %v248
    %v250 = vpop.f32.mrf.mxu0
    %251 = vdwg.mxu0
    %252 = vmatprep.subr.bf16.mxu0 0
    %253 = vmatpush1.bf16.xpose.msra.mxu0 0
    %254 = vmatprep.subr.bf16.mxu0 0
    %255 = vmatpush1.bf16.xpose.msra.mxu0 0
    %256 = vmatprep.subr.bf16.mxu0 0
    %257 = vmatpush1.bf16.xpose.msra.mxu0 0
    %258 = vmatprep.subr.bf16.mxu0 0
    %259 = vmatpush1.bf16.xpose.msra.mxu0 0
    %260 = vmatprep.subr.bf16.mxu0 0
    %261 = vmatpush1.bf16.xpose.msra.mxu0 0
    %262 = vmatprep.subr.bf16.mxu0 0
    %263 = vmatpush1.bf16.xpose.msra.mxu0 0
    %264 = vmatprep.subr.bf16.mxu0 0
    %265 = vmatpush1.bf16.xpose.msra.mxu0 0
    %266 = vmatprep.subr.bf16.mxu0 %v206
    %267 = vmatpush1.bf16.xpose.msra.mxu0 %v205
    %268 = vmatprep.subr.bf16.mxu0 0
    %269 = vmatpush2.bf16.xpose.msra.mxu0 0
    %270 = vmatprep.subr.bf16.mxu0 0
    %271 = vmatpush2.bf16.xpose.msra.mxu0 0
    %272 = vmatprep.subr.bf16.mxu0 0
    %273 = vmatpush2.bf16.xpose.msra.mxu0 0
    %274 = vmatprep.subr.bf16.mxu0 0
    %275 = vmatpush2.bf16.xpose.msra.mxu0 0
    %276 = vmatprep.subr.bf16.mxu0 0
    %277 = vmatpush2.bf16.xpose.msra.mxu0 0
    %278 = vmatprep.subr.bf16.mxu0 0
    %279 = vmatpush2.bf16.xpose.msra.mxu0 0
    %280 = vmatprep.subr.bf16.mxu0 0
    %281 = vmatpush2.bf16.xpose.msra.mxu0 0
    %282 = vmatprep.subr.bf16.mxu0 0
    %283 = vmatpush2.bf16.xpose.msra.mxu0 0
    %284 = vmatprep.mubr.bf16.mxu0 %v69
    %285 = vmatmul.mubr.bf16.gmra.mxu0 %v68
    %v286 = vpop.f32.mrf.mxu0
    %v287 = vadd.f32 %v246, %v286
    %v288 = vpop.f32.mrf.mxu0
    %v289 = vpop.f32.mrf.mxu0
    %v290 = vadd.f32 %v249, %v289
    %v291 = vpop.f32.mrf.mxu0
    %292 = vdwg.mxu0
    %v293 = vadd.f32 %v185, %v287
    %v294 = vadd.f32 %v186, %v290
    %295 = vst.msk [vmem:[#allocation3] sm:$0xff] %vm178, %v293
    %296 = vst.msk [vmem:[#allocation3 + $0x8] sm:$0xff] %vm178, %v294
    %v297 = vld [vmem:[#allocation4] sm:$0xff]
    %v298 = vld [vmem:[#allocation4 + $0x8] sm:$0xff]
    %v299 = vld [vmem:[%s1] sm:$0xff]
    %v300 = vld [vmem:[%s1 + $0x8] sm:$0xff]
    %v301 = vld [vmem:[%s1 + $0x10] sm:$0xff]
    %v302 = vld [vmem:[%s1 + $0x18] sm:$0xff]
    %v307 = vunpack.c.l.b16 %v299
    %v308 = vunpack.c.h.b16 %v299
    %v309 = vunpack.c.l.b16 %v300
    %v310 = vunpack.c.h.b16 %v300
    %v311 = vunpack.c.l.b16 %v301
    %v312 = vunpack.c.h.b16 %v301
    %v313 = vunpack.c.l.b16 %v302
    %v314 = vunpack.c.h.b16 %v302
    %v315 = vpack.c.b16 %v311, %v307
    %v316 = vpack.c.b16 %v312, %v308
    %v317 = vpack.c.b16 %v313, %v309
    %v318 = vpack.c.b16 %v314, %v310
    %323 = vmatprep.subr.bf16.mxu0 0
    %324 = vmatpush1.bf16.xpose.msra.mxu0 0
    %325 = vmatprep.subr.bf16.mxu0 0
    %326 = vmatpush1.bf16.xpose.msra.mxu0 0
    %327 = vmatprep.subr.bf16.mxu0 0
    %328 = vmatpush1.bf16.xpose.msra.mxu0 0
    %329 = vmatprep.subr.bf16.mxu0 0
    %330 = vmatpush1.bf16.xpose.msra.mxu0 0
    %331 = vmatprep.subr.bf16.mxu0 0
    %332 = vmatpush1.bf16.xpose.msra.mxu0 0
    %333 = vmatprep.subr.bf16.mxu0 0
    %334 = vmatpush1.bf16.xpose.msra.mxu0 0
    %335 = vmatprep.subr.bf16.mxu0 0
    %336 = vmatpush1.bf16.xpose.msra.mxu0 0
    %337 = vmatprep.subr.bf16.mxu0 %v87
    %338 = vmatpush1.bf16.xpose.msra.mxu0 %v86
    %339 = vmatprep.subr.bf16.mxu0 0
    %340 = vmatpush2.bf16.xpose.msra.mxu0 0
    %341 = vmatprep.subr.bf16.mxu0 0
    %342 = vmatpush2.bf16.xpose.msra.mxu0 0
    %343 = vmatprep.subr.bf16.mxu0 0
    %344 = vmatpush2.bf16.xpose.msra.mxu0 0
    %345 = vmatprep.subr.bf16.mxu0 0
    %346 = vmatpush2.bf16.xpose.msra.mxu0 0
    %347 = vmatprep.subr.bf16.mxu0 0
    %348 = vmatpush2.bf16.xpose.msra.mxu0 0
    %349 = vmatprep.subr.bf16.mxu0 0
    %350 = vmatpush2.bf16.xpose.msra.mxu0 0
    %351 = vmatprep.subr.bf16.mxu0 0
    %352 = vmatpush2.bf16.xpose.msra.mxu0 0
    %353 = vmatprep.subr.bf16.mxu0 0
    %354 = vmatpush2.bf16.xpose.msra.mxu0 0
    %355 = vmatprep.mubr.bf16.mxu0 %v316
    %356 = vmatmul.mubr.bf16.gmra.mxu0 %v315
    %v357 = vpop.f32.mrf.mxu0
    %v358 = vadd.f32 0.0, %v357
    %v359 = vpop.f32.mrf.mxu0
    %v360 = vpop.f32.mrf.mxu0
    %v361 = vadd.f32 0.0, %v360
    %v362 = vpop.f32.mrf.mxu0
    %363 = vdwg.mxu0
    %364 = vmatprep.subr.bf16.mxu0 0
    %365 = vmatpush1.bf16.xpose.msra.mxu0 0
    %366 = vmatprep.subr.bf16.mxu0 0
    %367 = vmatpush1.bf16.xpose.msra.mxu0 0
    %368 = vmatprep.subr.bf16.mxu0 0
    %369 = vmatpush1.bf16.xpose.msra.mxu0 0
    %370 = vmatprep.subr.bf16.mxu0 0
    %371 = vmatpush1.bf16.xpose.msra.mxu0 0
    %372 = vmatprep.subr.bf16.mxu0 0
    %373 = vmatpush1.bf16.xpose.msra.mxu0 0
    %374 = vmatprep.subr.bf16.mxu0 0
    %375 = vmatpush1.bf16.xpose.msra.mxu0 0
    %376 = vmatprep.subr.bf16.mxu0 0
    %377 = vmatpush1.bf16.xpose.msra.mxu0 0
    %378 = vmatprep.subr.bf16.mxu0 %v89
    %379 = vmatpush1.bf16.xpose.msra.mxu0 %v88
    %380 = vmatprep.subr.bf16.mxu0 0
    %381 = vmatpush2.bf16.xpose.msra.mxu0 0
    %382 = vmatprep.subr.bf16.mxu0 0
    %383 = vmatpush2.bf16.xpose.msra.mxu0 0
    %384 = vmatprep.subr.bf16.mxu0 0
    %385 = vmatpush2.bf16.xpose.msra.mxu0 0
    %386 = vmatprep.subr.bf16.mxu0 0
    %387 = vmatpush2.bf16.xpose.msra.mxu0 0
    %388 = vmatprep.subr.bf16.mxu0 0
    %389 = vmatpush2.bf16.xpose.msra.mxu0 0
    %390 = vmatprep.subr.bf16.mxu0 0
    %391 = vmatpush2.bf16.xpose.msra.mxu0 0
    %392 = vmatprep.subr.bf16.mxu0 0
    %393 = vmatpush2.bf16.xpose.msra.mxu0 0
    %394 = vmatprep.subr.bf16.mxu0 0
    %395 = vmatpush2.bf16.xpose.msra.mxu0 0
    %396 = vmatprep.mubr.bf16.mxu0 %v318
    %397 = vmatmul.mubr.bf16.gmra.mxu0 %v317
    %v398 = vpop.f32.mrf.mxu0
    %v399 = vadd.f32 %v358, %v398
    %v400 = vpop.f32.mrf.mxu0
    %v401 = vpop.f32.mrf.mxu0
    %v402 = vadd.f32 %v361, %v401
    %v403 = vpop.f32.mrf.mxu0
    %404 = vdwg.mxu0
    %v405 = vadd.f32 %v297, %v399
    %v406 = vadd.f32 %v298, %v402
    %407 = vst.msk [vmem:[#allocation4] sm:$0xff] %vm178, %v405
    %408 = vst.msk [vmem:[#allocation4 + $0x8] sm:$0xff] %vm178, %v406
  $region41: #{cross_entropy_wasserstein_loss.5} parent=0 // pred_fallthru
    _
  // Predicated region
  $region42: #{cross_entropy_wasserstein_loss.5} parent=0 // pred_check
    %p409 = pneg %p33
  $region43: #{cross_entropy_wasserstein_loss.5} parent=0 // pred_check_branch
    %411 = sbr.rel (%p409) target = $region45
  $region44: #{cross_entropy_wasserstein_loss.5} parent=0 // pred_region
    %v412 = vld [vmem:[%s4] sm:$0xff]
    %v413 = vld [vmem:[%s4 + $0x8] sm:$0xff]
    %v414 = vld [vmem:[%s5] sm:$0xff]
    %v415 = vld [vmem:[%s5 + $0x8] sm:$0xff]
    %v416 = vld [vmem:[%s6] sm:$0x1]
    %v417 = vld [vmem:[%s7] sm:$0x1]
    %419 = vset.pattern.permute.xlu0 0
    %420 = vperm.xlu0 %419, %v412
    %v421 = vpop.permute.xlu0 %420
    %424 = vset.pattern.permute.xlu0 0
    %425 = vperm.xlu0 %424, %v413
    %v426 = vpop.permute.xlu0 %425
    %v429 = vlaneseq
    %v430 = vshrl.u32 %v429, 7
    %v431 = vsub.s32 0, %v430
    %v432 = vrot.slane %v417, %v431
    %v434 = vadd.f32 %v421, %v432
    %v435 = vadd.f32 %v426, %v432
    %v436 = vld [vmem:[#allocation2] sm:$0xff]
    %v437 = vld [vmem:[#allocation2 + $0x8] sm:$0xff]
    %v438 = vmul.f32 %v436, 2.0
    %v439 = vmul.f32 %v437, 2.0
    %v440 = vsub.f32 %v434, %v438
    %v441 = vsub.f32 %v435, %v439
    %v442 = vmax.f32 %v440, 0.0
    %v443 = vmax.f32 %v441, 0.0
    %v444 = vrsqrt.pop %v442
    %v445 = vmul.f32 %v442, %v444
    %vm446 = vcmp.eq.f32.partialorder %v442, inf
    %v447 = vsel %vm446, %v442, %v445
    %vm448 = vcmp.eq.f32.partialorder %v442, 0.0
    %v449 = vand.u32 %v442, 2147483648
    %v450 = vsel %vm448, %v449, %v447
    %v451 = vrsqrt.pop %v443
    %v452 = vmul.f32 %v443, %v451
    %vm453 = vcmp.eq.f32.partialorder %v443, inf
    %v454 = vsel %vm453, %v443, %v452
    %vm455 = vcmp.eq.f32.partialorder %v443, 0.0
    %v456 = vand.u32 %v443, 2147483648
    %v457 = vsel %vm455, %v456, %v454
    %v458 = vpack.c.bf16 %v457, %v450
    %v460 = vunpack.c.l.b16 %v458
    %v461 = vunpack.c.h.b16 %v458
    %v462 = vpack.c.b16 %v460, %v460
    %v463 = vpack.c.b16 %v461, %v461
    %vm466 = vcmask 125952
    %467 = vst.msk [vmem:[%s8] sm:$0xf] %vm466, %v462
    %468 = vst.msk [vmem:[%s8 + $0x4] sm:$0xf] %vm466, %v463
    %v470 = vlaneseq
    %v471 = vshrl.u32 %v470, 7
    %v472 = vsub.s32 0, %v471
    %v473 = vrot.slane %v416, %v472
    %v475 = vadd.f32 %v421, %v473
    %v476 = vadd.f32 %v426, %v473
    %v477 = vld [vmem:[#allocation3] sm:$0xff]
    %v478 = vld [vmem:[#allocation3 + $0x8] sm:$0xff]
    %v479 = vmul.f32 %v477, 2.0
    %v480 = vmul.f32 %v478, 2.0
    %v481 = vsub.f32 %v475, %v479
    %v482 = vsub.f32 %v476, %v480
    %v483 = vmax.f32 %v481, 0.0
    %v484 = vmax.f32 %v482, 0.0
    %v485 = vrsqrt.pop %v483
    %v486 = vmul.f32 %v483, %v485
    %vm487 = vcmp.eq.f32.partialorder %v483, inf
    %v488 = vsel %vm487, %v483, %v486
    %vm489 = vcmp.eq.f32.partialorder %v483, 0.0
    %v490 = vand.u32 %v483, 2147483648
    %v491 = vsel %vm489, %v490, %v488
    %v492 = vrsqrt.pop %v484
    %v493 = vmul.f32 %v484, %v492
    %vm494 = vcmp.eq.f32.partialorder %v484, inf
    %v495 = vsel %vm494, %v484, %v493
    %vm496 = vcmp.eq.f32.partialorder %v484, 0.0
    %v497 = vand.u32 %v484, 2147483648
    %v498 = vsel %vm496, %v497, %v495
    %v499 = vpack.c.bf16 %v498, %v491
    %v501 = vunpack.c.l.b16 %v499
    %v502 = vunpack.c.h.b16 %v499
    %v503 = vpack.c.b16 %v501, %v501
    %v504 = vpack.c.b16 %v502, %v502
    %507 = vst.msk [vmem:[%s9] sm:$0xf] %vm466, %v503
    %508 = vst.msk [vmem:[%s9 + $0x4] sm:$0xf] %vm466, %v504
    %510 = vset.pattern.permute.xlu0 0
    %511 = vperm.xlu0 %510, %v414
    %v512 = vpop.permute.xlu0 %511
    %515 = vset.pattern.permute.xlu0 0
    %516 = vperm.xlu0 %515, %v415
    %v517 = vpop.permute.xlu0 %516
    %v519 = vadd.f32 %v512, %v432
    %v520 = vadd.f32 %v517, %v432
    %v521 = vld [vmem:[#allocation4] sm:$0xff]
    %v522 = vld [vmem:[#allocation4 + $0x8] sm:$0xff]
    %v523 = vmul.f32 %v521, 2.0
    %v524 = vmul.f32 %v522, 2.0
    %v525 = vsub.f32 %v519, %v523
    %v526 = vsub.f32 %v520, %v524
    %v527 = vmax.f32 %v525, 0.0
    %v528 = vmax.f32 %v526, 0.0
    %v529 = vrsqrt.pop %v527
    %v530 = vmul.f32 %v527, %v529
    %vm531 = vcmp.eq.f32.partialorder %v527, inf
    %v532 = vsel %vm531, %v527, %v530
    %vm533 = vcmp.eq.f32.partialorder %v527, 0.0
    %v534 = vand.u32 %v527, 2147483648
    %v535 = vsel %vm533, %v534, %v532
    %v536 = vrsqrt.pop %v528
    %v537 = vmul.f32 %v528, %v536
    %vm538 = vcmp.eq.f32.partialorder %v528, inf
    %v539 = vsel %vm538, %v528, %v537
    %vm540 = vcmp.eq.f32.partialorder %v528, 0.0
    %v541 = vand.u32 %v528, 2147483648
    %v542 = vsel %vm540, %v541, %v539
    %v543 = vpack.c.bf16 %v542, %v535
    %v545 = vunpack.c.l.b16 %v543
    %v546 = vunpack.c.h.b16 %v543
    %v547 = vpack.c.b16 %v545, %v545
    %v548 = vpack.c.b16 %v546, %v546
    %551 = vst.msk [vmem:[%s10] sm:$0xf] %vm466, %v547
    %552 = vst.msk [vmem:[%s10 + $0x4] sm:$0xf] %vm466, %v548
  $region45: #{cross_entropy_wasserstein_loss.5} parent=0 // pred_fallthru
    _
  // Predicated region
  $region46: #{cross_entropy_wasserstein_loss.5} parent=0 // pred_check
    _
  $region47: #{cross_entropy_wasserstein_loss.5} parent=0 // pred_check_branch
    %554 = sbr.rel (0) target = $region49
  $region48: #{cross_entropy_wasserstein_loss.5} parent=0 // pred_region
    _
  $region49: #{cross_entropy_wasserstein_loss.5} parent=0 // pred_fallthru
    _
  // Predicated region
  $region50: #{cross_entropy_wasserstein_loss.5} parent=0 // pred_check
    _
  $region51: #{cross_entropy_wasserstein_loss.5} parent=0 // pred_check_branch
    %556 = sbr.rel (0) target = $region53
  $region52: #{cross_entropy_wasserstein_loss.5} parent=0 // pred_region
    _
  $region53: #{cross_entropy_wasserstein_loss.5} parent=0 // pred_fallthru
    _
  // Predicated region
  $region54: #{cross_entropy_wasserstein_loss.5} parent=0 // pred_check
    _
  $region55: #{cross_entropy_wasserstein_loss.5} parent=0 // pred_check_branch
    %558 = sbr.rel (0) target = $region57
  $region56: #{cross_entropy_wasserstein_loss.5} parent=0 // pred_region
    _
  $region57: #{cross_entropy_wasserstein_loss.5} parent=0 // pred_fallthru
    _
  // Predicated region
  $region58: #{cross_entropy_wasserstein_loss.5} parent=0 // pred_check
    _
  $region59: #{cross_entropy_wasserstein_loss.5} parent=0 // pred_check_branch
    %560 = sbr.rel (0) target = $region61
  $region60: #{cross_entropy_wasserstein_loss.5} parent=0 // pred_region
    _
  $region61: #{cross_entropy_wasserstein_loss.5} parent=0 // pred_fallthru
    _
  // Predicated region
  $region62: #{cross_entropy_wasserstein_loss.5} parent=0 // pred_check
    _
  $region63: #{cross_entropy_wasserstein_loss.5} parent=0 // pred_check_branch
    %562 = sbr.rel (0) target = $region65
  $region64: #{cross_entropy_wasserstein_loss.5} parent=0 // pred_region
    _
  $region65: #{cross_entropy_wasserstein_loss.5} parent=0 // pred_fallthru
    _
  // Predicated region
  $region66: #{cross_entropy_wasserstein_loss.5} parent=0 // pred_check
    _
  $region67: #{cross_entropy_wasserstein_loss.5} parent=0 // pred_check_branch
    %564 = sbr.rel (0) target = $region69
  $region68: #{cross_entropy_wasserstein_loss.5} parent=0 // pred_region
    _
  $region69: #{cross_entropy_wasserstein_loss.5} parent=0 // pred_fallthru
    _

</llo_original>
